<compile_context>
chip_gen: v7x
topology: tpu7x:2x2x1
jax: 0.10.0
libtpu: 0.0.40
codegen_flags: <defaults>
</compile_context>

<pallas_src>
import jax
import jax.numpy as jnp
from jax import lax
from jax.experimental import pallas as pl
from jax.experimental.pallas import tpu as pltpu


def _attention_kernel(q_ref, k_ref, v_ref, wo_ref, b_ref, o_ref, obuf_ref):
    """One (batch, q-tile) grid step with ALL heads fused.

    q_ref:    (1, H, tq, Dh) bf16  pre-projected, pre-scaled queries (this tile)
    k_ref:    (1, H, N,  Dh) bf16  pre-projected keys   (full sequence)
    v_ref:    (1, H, N,  Dh) bf16  pre-projected values (full sequence)
    wo_ref:   (H*Dh, Dp)     bf16  output projection (columns lane-padded)
    b_ref:    (1, Dp)        f32   output bias (lane-padded)
    o_ref:    (1, tq, Dp)    f32   output tile
    obuf_ref: (tq, H*Dh)     bf16  scratch: per-head attention outputs
    """
    heads = q_ref.shape[1]
    dh = q_ref.shape[3]

    # Static (unrolled) head loop: only one (tq, N) f32 score tile is live at
    # a time, bounding VMEM/vreg pressure.
    for h in range(heads):
        q_h = q_ref[0, h]                                      # (tq, Dh) bf16
        k_h = k_ref[0, h]                                      # (N,  Dh) bf16
        v_h = v_ref[0, h]                                      # (N,  Dh) bf16

        # scores = q @ k^T : contract last axis of both (no explicit relayout).
        s = lax.dot_general(q_h, k_h, (((1,), (1,)), ((), ())),
                            preferred_element_type=jnp.float32)  # (tq, N) f32

        # Numerically stable softmax in f32; normalize the small (tq, Dh)
        # PV result instead of the (tq, N) probability matrix.
        s = s - jnp.max(s, axis=-1, keepdims=True)
        p = jnp.exp(s)
        l = jnp.sum(p, axis=-1, keepdims=True)                   # (tq, 1)

        o_h = jnp.dot(p.astype(jnp.bfloat16), v_h,
                      preferred_element_type=jnp.float32)        # (tq, Dh) f32
        o_h = o_h * pl.reciprocal(l, approx=True)

        obuf_ref[:, h * dh:(h + 1) * dh] = o_h.astype(jnp.bfloat16)

    # Single fused output projection over all heads: (tq, H*Dh) @ (H*Dh, Dp),
    # bias added once, lane-dense store.
    out = jnp.dot(obuf_ref[...], wo_ref[...],
                  preferred_element_type=jnp.float32)
    o_ref[0] = (out + b_ref[...]).astype(o_ref.dtype)


def attention_forward(x, w_qkv, w_out, b_out, *, heads, dim_head):
    """x: (B, N, D) f32. w_qkv: (D, 3*H*Dh). w_out: (H*Dh, D). b_out: (1, D)."""
    B, N, D = x.shape
    inner = heads * dim_head
    assert w_qkv.shape == (D, 3 * inner)
    assert w_out.shape == (inner, D)
    scale = dim_head ** (-0.5)

    # ---- QKV projection hoisted to one large XLA matmul (computed once, not
    # per q-tile / per head). Softmax scale folded into W_q.
    wq, wk, wv = jnp.split(w_qkv, 3, axis=-1)
    w_fused = jnp.concatenate([wq * scale, wk, wv], axis=-1).astype(jnp.bfloat16)
    qkv = jnp.dot(x.astype(jnp.bfloat16), w_fused,
                  preferred_element_type=jnp.bfloat16)          # (B, N, 3*inner)
    q, k, v = jnp.split(qkv, 3, axis=-1)

    def to_heads(t):          # (B, N, inner) -> (B, H, N, Dh), lane-aligned
        return t.reshape(B, N, heads, dim_head).transpose(0, 2, 1, 3)

    q, k, v = map(to_heads, (q, k, v))

    # ---- Lane-dense output path: pad model dim to a multiple of 128 so the
    # output projection and final store use unmasked vst; slice afterwards.
    d_pad = ((D + 127) // 128) * 128
    wo = w_out.astype(jnp.bfloat16)
    bo = jnp.asarray(b_out, jnp.float32).reshape(1, D)
    if d_pad != D:
        wo = jnp.pad(wo, ((0, 0), (0, d_pad - D)))
        bo = jnp.pad(bo, ((0, 0), (0, d_pad - D)))

    # ---- Q tiling: largest power-of-two tile (<= 256) dividing N; bounds the
    # per-step (tq, N) f32 score tile. Fallback tq=N keeps correctness for
    # awkward sequence lengths.
    tq = N
    for cand in (256, 128, 64, 32, 16, 8):
        if N % cand == 0:
            tq = cand
            break
    n_q = N // tq

    grid = (B, n_q)   # b outermost => K/V block index unchanged across q-tiles
                      # (Pallas re-uses the resident block, no re-DMA)

    out = pl.pallas_call(
        _attention_kernel,
        out_shape=jax.ShapeDtypeStruct((B, N, d_pad), jnp.float32),
        grid=grid,
        in_specs=[
            pl.BlockSpec((1, heads, tq, dim_head), lambda b, i: (b, 0, i, 0)),  # q tile
            pl.BlockSpec((1, heads, N, dim_head), lambda b, i: (b, 0, 0, 0)),   # k (full)
            pl.BlockSpec((1, heads, N, dim_head), lambda b, i: (b, 0, 0, 0)),   # v (full)
            pl.BlockSpec((inner, d_pad), lambda b, i: (0, 0)),                  # W_out
            pl.BlockSpec((1, d_pad), lambda b, i: (0, 0)),                      # bias
        ],
        out_specs=pl.BlockSpec((1, tq, d_pad), lambda b, i: (b, i, 0)),
        scratch_shapes=[pltpu.VMEM((tq, inner), jnp.bfloat16)],
        compiler_params=pltpu.CompilerParams(
            dimension_semantics=("parallel", "parallel")),
    )(q, k, v, wo, bo)

    if d_pad != D:
        out = out[:, :, :D]
    return out.astype(x.dtype)


def _reference(x, w_qkv, w_out, b_out, *, heads, dim_head):
    B, N, D = x.shape
    inner = heads * dim_head
    scale = dim_head ** (-0.5)
    qkv = x @ w_qkv                                     # (B, N, 3*inner)
    q, k, v = jnp.split(qkv, 3, axis=-1)

    def to_heads(t):
        return t.reshape(B, N, heads, dim_head).transpose(0, 2, 1, 3)

    q, k, v = map(to_heads, (q, k, v))                  # (B, H, N, Dh)
    dots = jnp.einsum('bhid,bhjd->bhij', q, k) * scale
    attn = jax.nn.softmax(dots, axis=-1)
    out = jnp.einsum('bhij,bhjd->bhid', attn, v)        # (B, H, N, Dh)
    out = out.transpose(0, 2, 1, 3).reshape(B, N, inner)
    return out @ w_out + b_out                          # Dropout(p=0) == identity


if __name__ == "__main__":
    heads, dim_head = 7, 64                # module defaults
    inner = heads * dim_head

    def make_inputs(key, B, N, D):
        kx, kq, kw, kb = jax.random.split(key, 4)
        x = jax.random.normal(kx, (B, N, D), dtype=jnp.float32)
        # Linear weights stored as (in, out) = transposed PyTorch layout.
        w_qkv = jax.random.normal(kq, (D, 3 * inner), jnp.float32) * (D ** -0.5)
        w_out = jax.random.normal(kw, (inner, D), jnp.float32) * (inner ** -0.5)
        b_out = jax.random.normal(kb, (1, D), jnp.float32) * 0.01
        return x, w_qkv, w_out, b_out

    key = jax.random.PRNGKey(0)
    k_small, k_big = jax.random.split(key, 2)

    # Small, module-consistent config.
    x, w_qkv, w_out, b_out = make_inputs(k_small, 2, 8, 32)
    y = jax.block_until_ready(
        attention_forward(x, w_qkv, w_out, b_out, heads=heads, dim_head=dim_head))
    y_ref = _reference(x, w_qkv, w_out, b_out[0], heads=heads, dim_head=dim_head)
    assert y.shape == x.shape
    # bf16 MXU operands + approx reciprocal -> looser tolerance than pure f32.
    assert jnp.allclose(y, y_ref, atol=5e-2, rtol=5e-2), "mismatch (small config)"

    # Larger config exercising the q-tiling / lane-aligned (no-pad) paths.
    x2, w_qkv2, w_out2, b_out2 = make_inputs(k_big, 2, 512, 128)
    y2 = jax.block_until_ready(
        attention_forward(x2, w_qkv2, w_out2, b_out2, heads=heads, dim_head=dim_head))
    y2_ref = _reference(x2, w_qkv2, w_out2, b_out2[0], heads=heads, dim_head=dim_head)
    assert y2.shape == x2.shape
    assert jnp.allclose(y2, y2_ref, atol=1e-1, rtol=1e-1), "mismatch (tiled config)"

    print("KERNEL_OK")
</pallas_src>

<mosaic_0001>
module attributes {stable_mosaic.version = 11 : i64} {
  func.func @_attention_kernel(%arg0: i32, %arg1: i32, %arg2: memref<1x7x8x64xbf16, #tpu.memory_space<vmem>>, %arg3: memref<1x7x8x64xbf16, #tpu.memory_space<vmem>>, %arg4: memref<1x7x8x64xbf16, #tpu.memory_space<vmem>>, %arg5: memref<448x128xbf16, #tpu.memory_space<vmem>>, %arg6: memref<1x128xf32, #tpu.memory_space<vmem>>, %arg7: memref<1x8x128xf32, #tpu.memory_space<vmem>>, %arg8: memref<8x448xbf16, #tpu.memory_space<vmem>>) attributes {dimension_semantics = [#tpu.dimension_semantics<parallel>, #tpu.dimension_semantics<parallel>], iteration_bounds = array<i64: 2, 1>, scalar_prefetch = 0 : i64, scratch_operands = 1 : i64, tpu.core_type = #tpu.core_type<tc>, window_params = [{transform_indices = @transform_0, window_bounds = array<i64: 1, 7, 8, 64>}, {transform_indices = @transform_1, window_bounds = array<i64: 1, 7, 8, 64>}, {transform_indices = @transform_2, window_bounds = array<i64: 1, 7, 8, 64>}, {pipeline_mode = #tpu.pipeline_mode<synchronous>, transform_indices = @transform_3, window_bounds = array<i64: 448, 128>}, {pipeline_mode = #tpu.pipeline_mode<synchronous>, transform_indices = @transform_4, window_bounds = array<i64: 1, 128>}, {transform_indices = @transform_5, window_bounds = array<i64: 1, 8, 128>}]} {
    %c0 = arith.constant 0 : index
    %c0_0 = arith.constant 0 : index
    %c0_1 = arith.constant 0 : index
    %c0_2 = arith.constant 0 : index
    %0 = vector.load %arg2[%c0, %c0_0, %c0_1, %c0_2] : memref<1x7x8x64xbf16, #tpu.memory_space<vmem>>, vector<1x1x8x64xbf16>
    %1 = vector.shape_cast %0 : vector<1x1x8x64xbf16> to vector<8x64xbf16>
    %c0_3 = arith.constant 0 : index
    %c0_4 = arith.constant 0 : index
    %c0_5 = arith.constant 0 : index
    %c0_6 = arith.constant 0 : index
    %2 = vector.load %arg3[%c0_3, %c0_4, %c0_5, %c0_6] : memref<1x7x8x64xbf16, #tpu.memory_space<vmem>>, vector<1x1x8x64xbf16>
    %3 = vector.shape_cast %2 : vector<1x1x8x64xbf16> to vector<8x64xbf16>
    %c0_7 = arith.constant 0 : index
    %c0_8 = arith.constant 0 : index
    %c0_9 = arith.constant 0 : index
    %c0_10 = arith.constant 0 : index
    %4 = vector.load %arg4[%c0_7, %c0_8, %c0_9, %c0_10] : memref<1x7x8x64xbf16, #tpu.memory_space<vmem>>, vector<1x1x8x64xbf16>
    %5 = vector.shape_cast %4 : vector<1x1x8x64xbf16> to vector<8x64xbf16>
    %cst = arith.constant dense<0.000000e+00> : vector<8x8xf32>
    %6 = tpu.matmul %1, %3, %cst {dimension_numbers = #tpu.dot_dimension_numbers<[1], [1], [0], [0], [0, 0, 1, 0], [], []>} : vector<8x64xbf16>, vector<8x64xbf16>, vector<8x8xf32> -> vector<8x8xf32>
    %cst_11 = arith.constant dense<0xFF800000> : vector<8xf32>
    %7 = vector.multi_reduction <maximumf>, %6, %cst_11 [1] : vector<8x8xf32> to vector<8xf32>
    %8 = vector.shape_cast %7 : vector<8xf32> to vector<8x1xf32>
    %9 = vector.broadcast %8 : vector<8x1xf32> to vector<8x8xf32>
    %10 = arith.subf %6, %9 : vector<8x8xf32>
    %11 = math.exp %10 : vector<8x8xf32>
    %cst_12 = arith.constant dense<0.000000e+00> : vector<8xf32>
    %12 = vector.multi_reduction <add>, %11, %cst_12 [1] : vector<8x8xf32> to vector<8xf32>
    %13 = vector.shape_cast %12 : vector<8xf32> to vector<8x1xf32>
    %14 = arith.truncf %11 : vector<8x8xf32> to vector<8x8xbf16>
    %cst_13 = arith.constant dense<0.000000e+00> : vector<8x64xf32>
    %15 = tpu.matmul %14, %5, %cst_13 {dimension_numbers = #tpu.dot_dimension_numbers<[1], [0], [0], [1], [0, 0, 1, 1], [], []>} : vector<8x8xbf16>, vector<8x64xbf16>, vector<8x64xf32> -> vector<8x64xf32>
    %16 = tpu.reciprocal %13 {approx = true} : vector<8x1xf32> -> vector<8x1xf32>
    %17 = vector.broadcast %16 : vector<8x1xf32> to vector<8x64xf32>
    %18 = arith.mulf %15, %17 : vector<8x64xf32>
    %19 = arith.truncf %18 : vector<8x64xf32> to vector<8x64xbf16>
    %c0_14 = arith.constant 0 : index
    %c0_15 = arith.constant 0 : index
    %20 = vector.load %arg8[%c0_14, %c0_15] : memref<8x448xbf16, #tpu.memory_space<vmem>>, vector<8x64xbf16>
    tpu.vector_store %arg8[%c0_14, %c0_15], %19 {strides = array<i32>} : memref<8x448xbf16, #tpu.memory_space<vmem>>, vector<8x64xbf16>,
    %c0_16 = arith.constant 0 : index
    %c1 = arith.constant 1 : index
    %c0_17 = arith.constant 0 : index
    %c0_18 = arith.constant 0 : index
    %21 = vector.load %arg2[%c0_16, %c1, %c0_17, %c0_18] : memref<1x7x8x64xbf16, #tpu.memory_space<vmem>>, vector<1x1x8x64xbf16>
    %22 = vector.shape_cast %21 : vector<1x1x8x64xbf16> to vector<8x64xbf16>
    %c0_19 = arith.constant 0 : index
    %c1_20 = arith.constant 1 : index
    %c0_21 = arith.constant 0 : index
    %c0_22 = arith.constant 0 : index
    %23 = vector.load %arg3[%c0_19, %c1_20, %c0_21, %c0_22] : memref<1x7x8x64xbf16, #tpu.memory_space<vmem>>, vector<1x1x8x64xbf16>
    %24 = vector.shape_cast %23 : vector<1x1x8x64xbf16> to vector<8x64xbf16>
    %c0_23 = arith.constant 0 : index
    %c1_24 = arith.constant 1 : index
    %c0_25 = arith.constant 0 : index
    %c0_26 = arith.constant 0 : index
    %25 = vector.load %arg4[%c0_23, %c1_24, %c0_25, %c0_26] : memref<1x7x8x64xbf16, #tpu.memory_space<vmem>>, vector<1x1x8x64xbf16>
    %26 = vector.shape_cast %25 : vector<1x1x8x64xbf16> to vector<8x64xbf16>
    %cst_27 = arith.constant dense<0.000000e+00> : vector<8x8xf32>
    %27 = tpu.matmul %22, %24, %cst_27 {dimension_numbers = #tpu.dot_dimension_numbers<[1], [1], [0], [0], [0, 0, 1, 0], [], []>} : vector<8x64xbf16>, vector<8x64xbf16>, vector<8x8xf32> -> vector<8x8xf32>
    %cst_28 = arith.constant dense<0xFF800000> : vector<8xf32>
    %28 = vector.multi_reduction <maximumf>, %27, %cst_28 [1] : vector<8x8xf32> to vector<8xf32>
    %29 = vector.shape_cast %28 : vector<8xf32> to vector<8x1xf32>
    %30 = vector.broadcast %29 : vector<8x1xf32> to vector<8x8xf32>
    %31 = arith.subf %27, %30 : vector<8x8xf32>
    %32 = math.exp %31 : vector<8x8xf32>
    %cst_29 = arith.constant dense<0.000000e+00> : vector<8xf32>
    %33 = vector.multi_reduction <add>, %32, %cst_29 [1] : vector<8x8xf32> to vector<8xf32>
    %34 = vector.shape_cast %33 : vector<8xf32> to vector<8x1xf32>
    %35 = arith.truncf %32 : vector<8x8xf32> to vector<8x8xbf16>
    %cst_30 = arith.constant dense<0.000000e+00> : vector<8x64xf32>
    %36 = tpu.matmul %35, %26, %cst_30 {dimension_numbers = #tpu.dot_dimension_numbers<[1], [0], [0], [1], [0, 0, 1, 1], [], []>} : vector<8x8xbf16>, vector<8x64xbf16>, vector<8x64xf32> -> vector<8x64xf32>
    %37 = tpu.reciprocal %34 {approx = true} : vector<8x1xf32> -> vector<8x1xf32>
    %38 = vector.broadcast %37 : vector<8x1xf32> to vector<8x64xf32>
    %39 = arith.mulf %36, %38 : vector<8x64xf32>
    %40 = arith.truncf %39 : vector<8x64xf32> to vector<8x64xbf16>
    %c0_31 = arith.constant 0 : index
    %c64 = arith.constant 64 : index
    %41 = vector.load %arg8[%c0_31, %c64] : memref<8x448xbf16, #tpu.memory_space<vmem>>, vector<8x64xbf16>
    tpu.vector_store %arg8[%c0_31, %c64], %40 {strides = array<i32>} : memref<8x448xbf16, #tpu.memory_space<vmem>>, vector<8x64xbf16>,
    %c0_32 = arith.constant 0 : index
    %c2 = arith.constant 2 : index
    %c0_33 = arith.constant 0 : index
    %c0_34 = arith.constant 0 : index
    %42 = vector.load %arg2[%c0_32, %c2, %c0_33, %c0_34] : memref<1x7x8x64xbf16, #tpu.memory_space<vmem>>, vector<1x1x8x64xbf16>
    %43 = vector.shape_cast %42 : vector<1x1x8x64xbf16> to vector<8x64xbf16>
    %c0_35 = arith.constant 0 : index
    %c2_36 = arith.constant 2 : index
    %c0_37 = arith.constant 0 : index
    %c0_38 = arith.constant 0 : index
    %44 = vector.load %arg3[%c0_35, %c2_36, %c0_37, %c0_38] : memref<1x7x8x64xbf16, #tpu.memory_space<vmem>>, vector<1x1x8x64xbf16>
    %45 = vector.shape_cast %44 : vector<1x1x8x64xbf16> to vector<8x64xbf16>
    %c0_39 = arith.constant 0 : index
    %c2_40 = arith.constant 2 : index
    %c0_41 = arith.constant 0 : index
    %c0_42 = arith.constant 0 : index
    %46 = vector.load %arg4[%c0_39, %c2_40, %c0_41, %c0_42] : memref<1x7x8x64xbf16, #tpu.memory_space<vmem>>, vector<1x1x8x64xbf16>
    %47 = vector.shape_cast %46 : vector<1x1x8x64xbf16> to vector<8x64xbf16>
    %cst_43 = arith.constant dense<0.000000e+00> : vector<8x8xf32>
    %48 = tpu.matmul %43, %45, %cst_43 {dimension_numbers = #tpu.dot_dimension_numbers<[1], [1], [0], [0], [0, 0, 1, 0], [], []>} : vector<8x64xbf16>, vector<8x64xbf16>, vector<8x8xf32> -> vector<8x8xf32>
    %cst_44 = arith.constant dense<0xFF800000> : vector<8xf32>
    %49 = vector.multi_reduction <maximumf>, %48, %cst_44 [1] : vector<8x8xf32> to vector<8xf32>
    %50 = vector.shape_cast %49 : vector<8xf32> to vector<8x1xf32>
    %51 = vector.broadcast %50 : vector<8x1xf32> to vector<8x8xf32>
    %52 = arith.subf %48, %51 : vector<8x8xf32>
    %53 = math.exp %52 : vector<8x8xf32>
    %cst_45 = arith.constant dense<0.000000e+00> : vector<8xf32>
    %54 = vector.multi_reduction <add>, %53, %cst_45 [1] : vector<8x8xf32> to vector<8xf32>
    %55 = vector.shape_cast %54 : vector<8xf32> to vector<8x1xf32>
    %56 = arith.truncf %53 : vector<8x8xf32> to vector<8x8xbf16>
    %cst_46 = arith.constant dense<0.000000e+00> : vector<8x64xf32>
    %57 = tpu.matmul %56, %47, %cst_46 {dimension_numbers = #tpu.dot_dimension_numbers<[1], [0], [0], [1], [0, 0, 1, 1], [], []>} : vector<8x8xbf16>, vector<8x64xbf16>, vector<8x64xf32> -> vector<8x64xf32>
    %58 = tpu.reciprocal %55 {approx = true} : vector<8x1xf32> -> vector<8x1xf32>
    %59 = vector.broadcast %58 : vector<8x1xf32> to vector<8x64xf32>
    %60 = arith.mulf %57, %59 : vector<8x64xf32>
    %61 = arith.truncf %60 : vector<8x64xf32> to vector<8x64xbf16>
    %c0_47 = arith.constant 0 : index
    %c128 = arith.constant 128 : index
    %62 = vector.load %arg8[%c0_47, %c128] : memref<8x448xbf16, #tpu.memory_space<vmem>>, vector<8x64xbf16>
    tpu.vector_store %arg8[%c0_47, %c128], %61 {strides = array<i32>} : memref<8x448xbf16, #tpu.memory_space<vmem>>, vector<8x64xbf16>,
    %c0_48 = arith.constant 0 : index
    %c3 = arith.constant 3 : index
    %c0_49 = arith.constant 0 : index
    %c0_50 = arith.constant 0 : index
    %63 = vector.load %arg2[%c0_48, %c3, %c0_49, %c0_50] : memref<1x7x8x64xbf16, #tpu.memory_space<vmem>>, vector<1x1x8x64xbf16>
    %64 = vector.shape_cast %63 : vector<1x1x8x64xbf16> to vector<8x64xbf16>
    %c0_51 = arith.constant 0 : index
    %c3_52 = arith.constant 3 : index
    %c0_53 = arith.constant 0 : index
    %c0_54 = arith.constant 0 : index
    %65 = vector.load %arg3[%c0_51, %c3_52, %c0_53, %c0_54] : memref<1x7x8x64xbf16, #tpu.memory_space<vmem>>, vector<1x1x8x64xbf16>
    %66 = vector.shape_cast %65 : vector<1x1x8x64xbf16> to vector<8x64xbf16>
    %c0_55 = arith.constant 0 : index
    %c3_56 = arith.constant 3 : index
    %c0_57 = arith.constant 0 : index
    %c0_58 = arith.constant 0 : index
    %67 = vector.load %arg4[%c0_55, %c3_56, %c0_57, %c0_58] : memref<1x7x8x64xbf16, #tpu.memory_space<vmem>>, vector<1x1x8x64xbf16>
    %68 = vector.shape_cast %67 : vector<1x1x8x64xbf16> to vector<8x64xbf16>
    %cst_59 = arith.constant dense<0.000000e+00> : vector<8x8xf32>
    %69 = tpu.matmul %64, %66, %cst_59 {dimension_numbers = #tpu.dot_dimension_numbers<[1], [1], [0], [0], [0, 0, 1, 0], [], []>} : vector<8x64xbf16>, vector<8x64xbf16>, vector<8x8xf32> -> vector<8x8xf32>
    %cst_60 = arith.constant dense<0xFF800000> : vector<8xf32>
    %70 = vector.multi_reduction <maximumf>, %69, %cst_60 [1] : vector<8x8xf32> to vector<8xf32>
    %71 = vector.shape_cast %70 : vector<8xf32> to vector<8x1xf32>
    %72 = vector.broadcast %71 : vector<8x1xf32> to vector<8x8xf32>
    %73 = arith.subf %69, %72 : vector<8x8xf32>
    %74 = math.exp %73 : vector<8x8xf32>
    %cst_61 = arith.constant dense<0.000000e+00> : vector<8xf32>
    %75 = vector.multi_reduction <add>, %74, %cst_61 [1] : vector<8x8xf32> to vector<8xf32>
    %76 = vector.shape_cast %75 : vector<8xf32> to vector<8x1xf32>
    %77 = arith.truncf %74 : vector<8x8xf32> to vector<8x8xbf16>
    %cst_62 = arith.constant dense<0.000000e+00> : vector<8x64xf32>
    %78 = tpu.matmul %77, %68, %cst_62 {dimension_numbers = #tpu.dot_dimension_numbers<[1], [0], [0], [1], [0, 0, 1, 1], [], []>} : vector<8x8xbf16>, vector<8x64xbf16>, vector<8x64xf32> -> vector<8x64xf32>
    %79 = tpu.reciprocal %76 {approx = true} : vector<8x1xf32> -> vector<8x1xf32>
    %80 = vector.broadcast %79 : vector<8x1xf32> to vector<8x64xf32>
    %81 = arith.mulf %78, %80 : vector<8x64xf32>
    %82 = arith.truncf %81 : vector<8x64xf32> to vector<8x64xbf16>
    %c0_63 = arith.constant 0 : index
    %c192 = arith.constant 192 : index
    %83 = vector.load %arg8[%c0_63, %c192] : memref<8x448xbf16, #tpu.memory_space<vmem>>, vector<8x64xbf16>
    tpu.vector_store %arg8[%c0_63, %c192], %82 {strides = array<i32>} : memref<8x448xbf16, #tpu.memory_space<vmem>>, vector<8x64xbf16>,
    %c0_64 = arith.constant 0 : index
    %c4 = arith.constant 4 : index
    %c0_65 = arith.constant 0 : index
    %c0_66 = arith.constant 0 : index
    %84 = vector.load %arg2[%c0_64, %c4, %c0_65, %c0_66] : memref<1x7x8x64xbf16, #tpu.memory_space<vmem>>, vector<1x1x8x64xbf16>
    %85 = vector.shape_cast %84 : vector<1x1x8x64xbf16> to vector<8x64xbf16>
    %c0_67 = arith.constant 0 : index
    %c4_68 = arith.constant 4 : index
    %c0_69 = arith.constant 0 : index
    %c0_70 = arith.constant 0 : index
    %86 = vector.load %arg3[%c0_67, %c4_68, %c0_69, %c0_70] : memref<1x7x8x64xbf16, #tpu.memory_space<vmem>>, vector<1x1x8x64xbf16>
    %87 = vector.shape_cast %86 : vector<1x1x8x64xbf16> to vector<8x64xbf16>
    %c0_71 = arith.constant 0 : index
    %c4_72 = arith.constant 4 : index
    %c0_73 = arith.constant 0 : index
    %c0_74 = arith.constant 0 : index
    %88 = vector.load %arg4[%c0_71, %c4_72, %c0_73, %c0_74] : memref<1x7x8x64xbf16, #tpu.memory_space<vmem>>, vector<1x1x8x64xbf16>
    %89 = vector.shape_cast %88 : vector<1x1x8x64xbf16> to vector<8x64xbf16>
    %cst_75 = arith.constant dense<0.000000e+00> : vector<8x8xf32>
    %90 = tpu.matmul %85, %87, %cst_75 {dimension_numbers = #tpu.dot_dimension_numbers<[1], [1], [0], [0], [0, 0, 1, 0], [], []>} : vector<8x64xbf16>, vector<8x64xbf16>, vector<8x8xf32> -> vector<8x8xf32>
    %cst_76 = arith.constant dense<0xFF800000> : vector<8xf32>
    %91 = vector.multi_reduction <maximumf>, %90, %cst_76 [1] : vector<8x8xf32> to vector<8xf32>
    %92 = vector.shape_cast %91 : vector<8xf32> to vector<8x1xf32>
    %93 = vector.broadcast %92 : vector<8x1xf32> to vector<8x8xf32>
    %94 = arith.subf %90, %93 : vector<8x8xf32>
    %95 = math.exp %94 : vector<8x8xf32>
    %cst_77 = arith.constant dense<0.000000e+00> : vector<8xf32>
    %96 = vector.multi_reduction <add>, %95, %cst_77 [1] : vector<8x8xf32> to vector<8xf32>
    %97 = vector.shape_cast %96 : vector<8xf32> to vector<8x1xf32>
    %98 = arith.truncf %95 : vector<8x8xf32> to vector<8x8xbf16>
    %cst_78 = arith.constant dense<0.000000e+00> : vector<8x64xf32>
    %99 = tpu.matmul %98, %89, %cst_78 {dimension_numbers = #tpu.dot_dimension_numbers<[1], [0], [0], [1], [0, 0, 1, 1], [], []>} : vector<8x8xbf16>, vector<8x64xbf16>, vector<8x64xf32> -> vector<8x64xf32>
    %100 = tpu.reciprocal %97 {approx = true} : vector<8x1xf32> -> vector<8x1xf32>
    %101 = vector.broadcast %100 : vector<8x1xf32> to vector<8x64xf32>
    %102 = arith.mulf %99, %101 : vector<8x64xf32>
    %103 = arith.truncf %102 : vector<8x64xf32> to vector<8x64xbf16>
    %c0_79 = arith.constant 0 : index
    %c256 = arith.constant 256 : index
    %104 = vector.load %arg8[%c0_79, %c256] : memref<8x448xbf16, #tpu.memory_space<vmem>>, vector<8x64xbf16>
    tpu.vector_store %arg8[%c0_79, %c256], %103 {strides = array<i32>} : memref<8x448xbf16, #tpu.memory_space<vmem>>, vector<8x64xbf16>,
    %c0_80 = arith.constant 0 : index
    %c5 = arith.constant 5 : index
    %c0_81 = arith.constant 0 : index
    %c0_82 = arith.constant 0 : index
    %105 = vector.load %arg2[%c0_80, %c5, %c0_81, %c0_82] : memref<1x7x8x64xbf16, #tpu.memory_space<vmem>>, vector<1x1x8x64xbf16>
    %106 = vector.shape_cast %105 : vector<1x1x8x64xbf16> to vector<8x64xbf16>
    %c0_83 = arith.constant 0 : index
    %c5_84 = arith.constant 5 : index
    %c0_85 = arith.constant 0 : index
    %c0_86 = arith.constant 0 : index
    %107 = vector.load %arg3[%c0_83, %c5_84, %c0_85, %c0_86] : memref<1x7x8x64xbf16, #tpu.memory_space<vmem>>, vector<1x1x8x64xbf16>
    %108 = vector.shape_cast %107 : vector<1x1x8x64xbf16> to vector<8x64xbf16>
    %c0_87 = arith.constant 0 : index
    %c5_88 = arith.constant 5 : index
    %c0_89 = arith.constant 0 : index
    %c0_90 = arith.constant 0 : index
    %109 = vector.load %arg4[%c0_87, %c5_88, %c0_89, %c0_90] : memref<1x7x8x64xbf16, #tpu.memory_space<vmem>>, vector<1x1x8x64xbf16>
    %110 = vector.shape_cast %109 : vector<1x1x8x64xbf16> to vector<8x64xbf16>
    %cst_91 = arith.constant dense<0.000000e+00> : vector<8x8xf32>
    %111 = tpu.matmul %106, %108, %cst_91 {dimension_numbers = #tpu.dot_dimension_numbers<[1], [1], [0], [0], [0, 0, 1, 0], [], []>} : vector<8x64xbf16>, vector<8x64xbf16>, vector<8x8xf32> -> vector<8x8xf32>
    %cst_92 = arith.constant dense<0xFF800000> : vector<8xf32>
    %112 = vector.multi_reduction <maximumf>, %111, %cst_92 [1] : vector<8x8xf32> to vector<8xf32>
    %113 = vector.shape_cast %112 : vector<8xf32> to vector<8x1xf32>
    %114 = vector.broadcast %113 : vector<8x1xf32> to vector<8x8xf32>
    %115 = arith.subf %111, %114 : vector<8x8xf32>
    %116 = math.exp %115 : vector<8x8xf32>
    %cst_93 = arith.constant dense<0.000000e+00> : vector<8xf32>
    %117 = vector.multi_reduction <add>, %116, %cst_93 [1] : vector<8x8xf32> to vector<8xf32>
    %118 = vector.shape_cast %117 : vector<8xf32> to vector<8x1xf32>
    %119 = arith.truncf %116 : vector<8x8xf32> to vector<8x8xbf16>
    %cst_94 = arith.constant dense<0.000000e+00> : vector<8x64xf32>
    %120 = tpu.matmul %119, %110, %cst_94 {dimension_numbers = #tpu.dot_dimension_numbers<[1], [0], [0], [1], [0, 0, 1, 1], [], []>} : vector<8x8xbf16>, vector<8x64xbf16>, vector<8x64xf32> -> vector<8x64xf32>
    %121 = tpu.reciprocal %118 {approx = true} : vector<8x1xf32> -> vector<8x1xf32>
    %122 = vector.broadcast %121 : vector<8x1xf32> to vector<8x64xf32>
    %123 = arith.mulf %120, %122 : vector<8x64xf32>
    %124 = arith.truncf %123 : vector<8x64xf32> to vector<8x64xbf16>
    %c0_95 = arith.constant 0 : index
    %c320 = arith.constant 320 : index
    %125 = vector.load %arg8[%c0_95, %c320] : memref<8x448xbf16, #tpu.memory_space<vmem>>, vector<8x64xbf16>
    tpu.vector_store %arg8[%c0_95, %c320], %124 {strides = array<i32>} : memref<8x448xbf16, #tpu.memory_space<vmem>>, vector<8x64xbf16>,
    %c0_96 = arith.constant 0 : index
    %c6 = arith.constant 6 : index
    %c0_97 = arith.constant 0 : index
    %c0_98 = arith.constant 0 : index
    %126 = vector.load %arg2[%c0_96, %c6, %c0_97, %c0_98] : memref<1x7x8x64xbf16, #tpu.memory_space<vmem>>, vector<1x1x8x64xbf16>
    %127 = vector.shape_cast %126 : vector<1x1x8x64xbf16> to vector<8x64xbf16>
    %c0_99 = arith.constant 0 : index
    %c6_100 = arith.constant 6 : index
    %c0_101 = arith.constant 0 : index
    %c0_102 = arith.constant 0 : index
    %128 = vector.load %arg3[%c0_99, %c6_100, %c0_101, %c0_102] : memref<1x7x8x64xbf16, #tpu.memory_space<vmem>>, vector<1x1x8x64xbf16>
    %129 = vector.shape_cast %128 : vector<1x1x8x64xbf16> to vector<8x64xbf16>
    %c0_103 = arith.constant 0 : index
    %c6_104 = arith.constant 6 : index
    %c0_105 = arith.constant 0 : index
    %c0_106 = arith.constant 0 : index
    %130 = vector.load %arg4[%c0_103, %c6_104, %c0_105, %c0_106] : memref<1x7x8x64xbf16, #tpu.memory_space<vmem>>, vector<1x1x8x64xbf16>
    %131 = vector.shape_cast %130 : vector<1x1x8x64xbf16> to vector<8x64xbf16>
    %cst_107 = arith.constant dense<0.000000e+00> : vector<8x8xf32>
    %132 = tpu.matmul %127, %129, %cst_107 {dimension_numbers = #tpu.dot_dimension_numbers<[1], [1], [0], [0], [0, 0, 1, 0], [], []>} : vector<8x64xbf16>, vector<8x64xbf16>, vector<8x8xf32> -> vector<8x8xf32>
    %cst_108 = arith.constant dense<0xFF800000> : vector<8xf32>
    %133 = vector.multi_reduction <maximumf>, %132, %cst_108 [1] : vector<8x8xf32> to vector<8xf32>
    %134 = vector.shape_cast %133 : vector<8xf32> to vector<8x1xf32>
    %135 = vector.broadcast %134 : vector<8x1xf32> to vector<8x8xf32>
    %136 = arith.subf %132, %135 : vector<8x8xf32>
    %137 = math.exp %136 : vector<8x8xf32>
    %cst_109 = arith.constant dense<0.000000e+00> : vector<8xf32>
    %138 = vector.multi_reduction <add>, %137, %cst_109 [1] : vector<8x8xf32> to vector<8xf32>
    %139 = vector.shape_cast %138 : vector<8xf32> to vector<8x1xf32>
    %140 = arith.truncf %137 : vector<8x8xf32> to vector<8x8xbf16>
    %cst_110 = arith.constant dense<0.000000e+00> : vector<8x64xf32>
    %141 = tpu.matmul %140, %131, %cst_110 {dimension_numbers = #tpu.dot_dimension_numbers<[1], [0], [0], [1], [0, 0, 1, 1], [], []>} : vector<8x8xbf16>, vector<8x64xbf16>, vector<8x64xf32> -> vector<8x64xf32>
    %142 = tpu.reciprocal %139 {approx = true} : vector<8x1xf32> -> vector<8x1xf32>
    %143 = vector.broadcast %142 : vector<8x1xf32> to vector<8x64xf32>
    %144 = arith.mulf %141, %143 : vector<8x64xf32>
    %145 = arith.truncf %144 : vector<8x64xf32> to vector<8x64xbf16>
    %c0_111 = arith.constant 0 : index
    %c384 = arith.constant 384 : index
    %146 = vector.load %arg8[%c0_111, %c384] : memref<8x448xbf16, #tpu.memory_space<vmem>>, vector<8x64xbf16>
    tpu.vector_store %arg8[%c0_111, %c384], %145 {strides = array<i32>} : memref<8x448xbf16, #tpu.memory_space<vmem>>, vector<8x64xbf16>,
    %c0_112 = arith.constant 0 : index
    %c0_113 = arith.constant 0 : index
    %147 = vector.load %arg8[%c0_112, %c0_113] : memref<8x448xbf16, #tpu.memory_space<vmem>>, vector<8x448xbf16>
    %c0_114 = arith.constant 0 : index
    %c0_115 = arith.constant 0 : index
    %148 = vector.load %arg5[%c0_114, %c0_115] : memref<448x128xbf16, #tpu.memory_space<vmem>>, vector<448x128xbf16>
    %cst_116 = arith.constant dense<0.000000e+00> : vector<8x128xf32>
    %149 = tpu.matmul %147, %148, %cst_116 {dimension_numbers = #tpu.dot_dimension_numbers<[1], [0], [0], [1], [0, 0, 1, 1], [], []>} : vector<8x448xbf16>, vector<448x128xbf16>, vector<8x128xf32> -> vector<8x128xf32>
    %c0_117 = arith.constant 0 : index
    %c0_118 = arith.constant 0 : index
    %150 = vector.load %arg6[%c0_117, %c0_118] : memref<1x128xf32, #tpu.memory_space<vmem>>, vector<1x128xf32>
    %151 = vector.broadcast %150 : vector<1x128xf32> to vector<8x128xf32>
    %152 = arith.addf %149, %151 : vector<8x128xf32>
    %c0_119 = arith.constant 0 : index
    %c0_120 = arith.constant 0 : index
    %c0_121 = arith.constant 0 : index
    %153 = vector.load %arg7[%c0_119, %c0_120, %c0_121] : memref<1x8x128xf32, #tpu.memory_space<vmem>>, vector<1x8x128xf32>
    %154 = vector.shape_cast %153 : vector<1x8x128xf32> to vector<8x128xf32>
    %155 = vector.shape_cast %152 : vector<8x128xf32> to vector<1x8x128xf32>
    tpu.vector_store %arg7[%c0_119, %c0_120, %c0_121], %155 {strides = array<i32>} : memref<1x8x128xf32, #tpu.memory_space<vmem>>, vector<1x8x128xf32>,
    return
  }
  func.func @transform_0(%arg0: i32, %arg1: i32) -> (i32, i32, i32, i32) {
    %c0_i32 = arith.constant 0 : i32
    %c0_i32_0 = arith.constant 0 : i32
    %c0_i32_1 = arith.constant 0 : i32
    return %arg0, %c0_i32, %arg1, %c0_i32_0 : i32, i32, i32, i32
  }
  func.func @transform_1(%arg0: i32, %arg1: i32) -> (i32, i32, i32, i32) {
    %c0_i32 = arith.constant 0 : i32
    %c0_i32_0 = arith.constant 0 : i32
    %c0_i32_1 = arith.constant 0 : i32
    %c0_i32_2 = arith.constant 0 : i32
    return %arg0, %c0_i32, %c0_i32_0, %c0_i32_1 : i32, i32, i32, i32
  }
  func.func @transform_2(%arg0: i32, %arg1: i32) -> (i32, i32, i32, i32) {
    %c0_i32 = arith.constant 0 : i32
    %c0_i32_0 = arith.constant 0 : i32
    %c0_i32_1 = arith.constant 0 : i32
    %c0_i32_2 = arith.constant 0 : i32
    return %arg0, %c0_i32, %c0_i32_0, %c0_i32_1 : i32, i32, i32, i32
  }
  func.func @transform_3(%arg0: i32, %arg1: i32) -> (i32, i32) {
    %c0_i32 = arith.constant 0 : i32
    %c0_i32_0 = arith.constant 0 : i32
    %c0_i32_1 = arith.constant 0 : i32
    return %c0_i32, %c0_i32_0 : i32, i32
  }
  func.func @transform_4(%arg0: i32, %arg1: i32) -> (i32, i32) {
    %c0_i32 = arith.constant 0 : i32
    %c0_i32_0 = arith.constant 0 : i32
    %c0_i32_1 = arith.constant 0 : i32
    return %c0_i32, %c0_i32_0 : i32, i32
  }
  func.func @transform_5(%arg0: i32, %arg1: i32) -> (i32, i32, i32) {
    %c0_i32 = arith.constant 0 : i32
    %c0_i32_0 = arith.constant 0 : i32
    return %arg0, %arg1, %c0_i32 : i32, i32, i32
  }
}

</mosaic_0001>

<llo_original>
// kernel: tpu_custom_call.1
$region0: #{tpu_custom_call.1}
  #allocation0 [shape = 'u32[]', space=smem, size = 0x4, offset = 0x4, fixed_abs, tag = 'smem constant byte address 0x4 - core index']
  #allocation1 [shape = 'u32[144,128]{1,0:T(1,128)}', space=vmem, size = 0x12000, scoped, tag = 'internal scratch']
  #allocation2 [shape = 'bf16[8,448]{1,0:T(8,128)(2,1)}', space=vmem, size = 0x2000, scoped, tag = 'scratch operand']
  %s0 = inlined_call_operand.hbm [shape: bf16[2,7,8,64], index: 0, kind: input, shape index: {}]
  %s1 = inlined_call_operand.hbm [shape: bf16[2,7,8,64], index: 1, kind: input, shape index: {}]
  %s2 = inlined_call_operand.hbm [shape: bf16[2,7,8,64], index: 2, kind: input, shape index: {}]
  %s3 = inlined_call_operand.hbm [shape: bf16[448,128], index: 3, kind: input, shape index: {}]
  %s4 = inlined_call_operand.vmem [shape: f32[1,128], index: 4, kind: input, shape index: {}]
  %s5 = inlined_call_operand.hbm [shape: f32[2,8,128], index: 5, kind: output, shape index: {}]
  %s6 = sld [smem:[#allocation0]]
  $region69: #{tpu_custom_call.1} parent=0
    _
  %s8 = ssub.s32 1, %s6
  %s9 = scalar_select 0, %s8, %s6
  $region1: #{tpu_custom_call.1} parent=0
    #allocation3 [shape = 'u8[28672]{0}', space=vmem, size = 0x7000, scoped, tag = 'input window, operand 0']
    #allocation4 [shape = 's32[2]{0}', space=sflag, size = 0x8, scoped, tag = 'scoped memory for tpu_custom_call.1']
    #allocation5 [shape = 's32[2]{0}', space=sflag, size = 0x8, scoped, tag = 'scoped memory for tpu_custom_call.1']
    #allocation6 [shape = 'u8[28672]{0}', space=vmem, size = 0x7000, scoped, tag = 'input window, operand 1']
    #allocation7 [shape = 's32[2]{0}', space=sflag, size = 0x8, scoped, tag = 'scoped memory for tpu_custom_call.1']
    #allocation8 [shape = 'u8[28672]{0}', space=vmem, size = 0x7000, scoped, tag = 'input window, operand 2']
    #allocation9 [shape = 'u8[114688]{0}', space=vmem, size = 0x1c000, scoped, tag = 'input window, operand 3, single buffered']
    #allocation10 [shape = 's32[1]{0}', space=sflag, size = 0x4, scoped, tag = 'scoped memory for tpu_custom_call.1']
    #allocation11 [shape = 'u8[8192]{0}', space=vmem, size = 0x2000, scoped, tag = 'output window, operand 0']
    %10 = vsyncpa [#allocation4], 0
    %s11 = scalar_lea.sflag [#allocation4], 1
    %12 = vsyncpa %s11, 0
    %13 = vsyncpa [#allocation7], 0
    %s14 = scalar_lea.sflag [#allocation7], 1
    %15 = vsyncpa %s14, 0
    %16 = vsyncpa [#allocation10], 0
    %17 = vsyncpa [#allocation5], 0
    %s18 = scalar_lea.sflag [#allocation5], 1
    %19 = vsyncpa %s18, 0
    loop: start=0, step=1, limit=4
    $region2: #{tpu_custom_call.1} parent=1 // loop_pre_header
      _
    $region3: #{tpu_custom_call.1} parent=1 // loop_header
      %s21 = sphi 0, %s25
      %p22 = scmp.ge.s32.totalorder %s21, 4
      %s28 = sphi 0, %s40
      %s29 = sphi 0, %s36
      %s30 = sphi 0, %s28
      %s31 = sphi 0, %s29
      %s32 = sphi 0, %s30
      %s33 = sphi 0, %s31
      %s45 = sphi 0, %s47
      %s48 = sphi 0, %s45
      %s49 = sphi 0, %s48
      %s65 = sphi 0, %s49
      %s71 = sphi 0, %s73
      %s74 = sphi 0, %s71
      %s75 = sphi 0, %s74
      %s91 = sphi 0, %s75
      %s97 = sphi 0, %s99
      %s100 = sphi 0, %s97
      %s101 = sphi 0, %s100
      %s117 = sphi 0, %s101
      %s121 = sphi 0, %s121
      %s123 = sphi 0, %s121
      %s124 = sphi 0, %s123
      %s138 = sphi 0, %s124
      %s142 = sphi 0, %s142
      %s144 = sphi 0, %s142
      %s145 = sphi 0, %s144
      %s159 = sphi 0, %s145
      %s167 = sphi 0, %s169
      %s170 = sphi 0, %s167
      %s171 = sphi 0, %s170
      %s187 = sphi 0, %s171
    $region4: #{tpu_custom_call.1} parent=1 // loop_header_branch
      %24 = sbr.rel (%p22) target = $region8
    $region5: #{tpu_custom_call.1} parent=1 // loop_body
      %s26 = ssub.s32 %s21, 1
      %s27 = ssub.s32 %s21, 2
      %s34 = sadd.s32 1, %s29
      %p35 = scmp.ge.s32.totalorder %s34, 1
      %s36 = scalar_select %p35, 0, %s34
      %s37 = sadd.s32 1, %s28
      %s38 = scalar_select %p35, %s37, %s28
      %p39 = scmp.ge.s32.totalorder %s38, 2
      %s40 = scalar_select %p39, 0, %s38
      %s41 = ssub.s32 %s28, %s40
      %s42 = ssub.s32 %s29, %s36
      %s43 = sor.u32 %s41, %s42
      %p44 = scmp.eq.s32.totalorder %s43, 0
      %s46 = sadd.s32 %s45, 1
      %s47 = scalar_select %p44, %s45, %s46
      %p50 = pneg %p44
      %p51 = scmp.eq.s32.totalorder %s21, 1
      %p52 = por %p50, %p51
      %p53 = scmp.ne.s32.totalorder %s45, %s48
      %p54 = scmp.eq.s32.totalorder %s21, 0
      %p55 = por %p53, %p54
      %p56 = scmp.ne.s32.totalorder %s45, %s48
      %p57 = scmp.eq.s32.totalorder %s26, 1
      %p58 = por %p56, %p57
      %p59 = scmp.ne.s32.totalorder %s48, %s49
      %p60 = scmp.eq.s32.totalorder %s26, 0
      %p61 = por %p59, %p60
      %p62 = scmp.ne.s32.totalorder %s48, %s49
      %p63 = scmp.eq.s32.totalorder %s27, 1
      %p64 = por %p62, %p63
      %p66 = scmp.ne.s32.totalorder %s49, %s65
      %p67 = scmp.eq.s32.totalorder %s27, 0
      %p68 = por %p66, %p67
      %s69 = ssub.s32 %s28, %s40
      %p70 = scmp.eq.s32.totalorder %s69, 0
      %s72 = sadd.s32 %s71, 1
      %s73 = scalar_select %p70, %s71, %s72
      %p76 = pneg %p70
      %p77 = scmp.eq.s32.totalorder %s21, 1
      %p78 = por %p76, %p77
      %p79 = scmp.ne.s32.totalorder %s71, %s74
      %p80 = scmp.eq.s32.totalorder %s21, 0
      %p81 = por %p79, %p80
      %p82 = scmp.ne.s32.totalorder %s71, %s74
      %p83 = scmp.eq.s32.totalorder %s26, 1
      %p84 = por %p82, %p83
      %p85 = scmp.ne.s32.totalorder %s74, %s75
      %p86 = scmp.eq.s32.totalorder %s26, 0
      %p87 = por %p85, %p86
      %p88 = scmp.ne.s32.totalorder %s74, %s75
      %p89 = scmp.eq.s32.totalorder %s27, 1
      %p90 = por %p88, %p89
      %p92 = scmp.ne.s32.totalorder %s75, %s91
      %p93 = scmp.eq.s32.totalorder %s27, 0
      %p94 = por %p92, %p93
      %s95 = ssub.s32 %s28, %s40
      %p96 = scmp.eq.s32.totalorder %s95, 0
      %s98 = sadd.s32 %s97, 1
      %s99 = scalar_select %p96, %s97, %s98
      %p102 = pneg %p96
      %p103 = scmp.eq.s32.totalorder %s21, 1
      %p104 = por %p102, %p103
      %p105 = scmp.ne.s32.totalorder %s97, %s100
      %p106 = scmp.eq.s32.totalorder %s21, 0
      %p107 = por %p105, %p106
      %p108 = scmp.ne.s32.totalorder %s97, %s100
      %p109 = scmp.eq.s32.totalorder %s26, 1
      %p110 = por %p108, %p109
      %p111 = scmp.ne.s32.totalorder %s100, %s101
      %p112 = scmp.eq.s32.totalorder %s26, 0
      %p113 = por %p111, %p112
      %p114 = scmp.ne.s32.totalorder %s100, %s101
      %p115 = scmp.eq.s32.totalorder %s27, 1
      %p116 = por %p114, %p115
      %p118 = scmp.ne.s32.totalorder %s101, %s117
      %p119 = scmp.eq.s32.totalorder %s27, 0
      %p120 = por %p118, %p119
      %s122 = sadd.s32 %s121, 1
      %p125 = scmp.eq.s32.totalorder %s21, 1
      %p126 = scmp.ne.s32.totalorder %s121, %s123
      %p127 = scmp.eq.s32.totalorder %s21, 0
      %p128 = por %p126, %p127
      %p129 = scmp.ne.s32.totalorder %s121, %s123
      %p130 = scmp.eq.s32.totalorder %s26, 1
      %p131 = por %p129, %p130
      %p132 = scmp.ne.s32.totalorder %s123, %s124
      %p133 = scmp.eq.s32.totalorder %s26, 0
      %p134 = por %p132, %p133
      %p135 = scmp.ne.s32.totalorder %s123, %s124
      %p136 = scmp.eq.s32.totalorder %s27, 1
      %p137 = por %p135, %p136
      %p139 = scmp.ne.s32.totalorder %s124, %s138
      %p140 = scmp.eq.s32.totalorder %s27, 0
      %p141 = por %p139, %p140
      %s143 = sadd.s32 %s142, 1
      %p146 = scmp.eq.s32.totalorder %s21, 1
      %p147 = scmp.ne.s32.totalorder %s142, %s144
      %p148 = scmp.eq.s32.totalorder %s21, 0
      %p149 = por %p147, %p148
      %p150 = scmp.ne.s32.totalorder %s142, %s144
      %p151 = scmp.eq.s32.totalorder %s26, 1
      %p152 = por %p150, %p151
      %p153 = scmp.ne.s32.totalorder %s144, %s145
      %p154 = scmp.eq.s32.totalorder %s26, 0
      %p155 = por %p153, %p154
      %p156 = scmp.ne.s32.totalorder %s144, %s145
      %p157 = scmp.eq.s32.totalorder %s27, 1
      %p158 = por %p156, %p157
      %p160 = scmp.ne.s32.totalorder %s145, %s159
      %p161 = scmp.eq.s32.totalorder %s27, 0
      %p162 = por %p160, %p161
      %s163 = ssub.s32 %s28, %s40
      %s164 = ssub.s32 %s29, %s36
      %s165 = sor.u32 %s163, %s164
      %p166 = scmp.eq.s32.totalorder %s165, 0
      %s168 = sadd.s32 %s167, 1
      %s169 = scalar_select %p166, %s167, %s168
      %p172 = pneg %p166
      %p173 = scmp.eq.s32.totalorder %s21, 1
      %p174 = por %p172, %p173
      %p175 = scmp.ne.s32.totalorder %s167, %s170
      %p176 = scmp.eq.s32.totalorder %s21, 0
      %p177 = por %p175, %p176
      %p178 = scmp.ne.s32.totalorder %s167, %s170
      %p179 = scmp.eq.s32.totalorder %s26, 1
      %p180 = por %p178, %p179
      %p181 = scmp.ne.s32.totalorder %s170, %s171
      %p182 = scmp.eq.s32.totalorder %s26, 0
      %p183 = por %p181, %p182
      %p184 = scmp.ne.s32.totalorder %s170, %s171
      %p185 = scmp.eq.s32.totalorder %s27, 1
      %p186 = por %p184, %p185
      %p188 = scmp.ne.s32.totalorder %s171, %s187
      %p189 = scmp.eq.s32.totalorder %s27, 0
      %p190 = por %p188, %p189
      %p191 = scmp.le.s32.totalorder 1, %s21
      %p192 = scmp.lt.s32.totalorder %s21, 3
      %p193 = pnand %p191, %p192
      %p194 = pneg %p193
      // Predicated region
      $region9: #{tpu_custom_call.1} parent=5 // pred_check
        _
      $region10: #{tpu_custom_call.1} parent=5 // pred_check_branch
        %196 = sbr.rel (%p193) target = $region12
      $region11: #{tpu_custom_call.1} parent=5 // pred_region
        %s197 = ssub.s32 %s21, 1
        // Predicated region
        $region13: #{tpu_custom_call.1} parent=11 // pred_check
          %p198 = pneg %p134
        $region14: #{tpu_custom_call.1} parent=11 // pred_check_branch
          %200 = sbr.rel (%p198) target = $region16
        $region15: #{tpu_custom_call.1} parent=11 // pred_region
          %s202 = ssub.s32 3584, 3584
          %203 = vsyncadd [#allocation10], %s202
          %s204 = sshll.u32 [#allocation9], 4
          %s205 = int_to_ptr.vmem [resolvable:$true] %s204
          %210 = dma.hbm_to_vmem [thread:$0]  %s3, 3584, %s205, [#allocation10], 64, 64, 4
        $region16: #{tpu_custom_call.1} parent=11 // pred_fallthru
          _
        // Predicated region
        $region17: #{tpu_custom_call.1} parent=11 // pred_check
          %p211 = pneg %p155
        $region18: #{tpu_custom_call.1} parent=11 // pred_check_branch
          %213 = sbr.rel (%p211) target = $region20
        $region19: #{tpu_custom_call.1} parent=11 // pred_region
          _
        $region20: #{tpu_custom_call.1} parent=11 // pred_fallthru
          _
      $region12: #{tpu_custom_call.1} parent=5 // pred_fallthru
        _
      %p214 = scmp.lt.s32.totalorder %s21, 2
      // Predicated region
      $region21: #{tpu_custom_call.1} parent=5 // pred_check
        %p215 = pneg %p214
      $region22: #{tpu_custom_call.1} parent=5 // pred_check_branch
        %217 = sbr.rel (%p215) target = $region24
      $region23: #{tpu_custom_call.1} parent=5 // pred_region
        // Predicated region
        $region25: #{tpu_custom_call.1} parent=23 // pred_check
          %p218 = pneg %p55
        $region26: #{tpu_custom_call.1} parent=23 // pred_check_branch
          %220 = sbr.rel (%p218) target = $region28
        $region27: #{tpu_custom_call.1} parent=23 // pred_region
          %s221 = sand.u32 %s45, 1
          %s222 = scalar_lea.sflag [#allocation4], %s221
          %s223 = sand.u32 %s45, 1
          %s224 = smul.addr %s223, 28
          %s225 = scalar_lea.vmem [#allocation3], %s224
          %s227 = ssub.s32 448, 448
          %228 = vsyncadd %s222, %s227
          %s229 = smul.addr %s28, 7
          %s230 = sadd.s32 %s29, %s229
          %s231 = smul.addr %s230, 64
          %s232 = scalar_lea.hbm %s0, %s231
          %s233 = sshll.u32 %s225, 4
          %s234 = int_to_ptr.vmem [resolvable:$true] %s233
          %239 = dma.hbm_to_vmem [thread:$0]  %s232, 448, %s234, %s222, 64, 64, 4
        $region28: #{tpu_custom_call.1} parent=23 // pred_fallthru
          _
        // Predicated region
        $region29: #{tpu_custom_call.1} parent=23 // pred_check
          %p240 = pneg %p81
        $region30: #{tpu_custom_call.1} parent=23 // pred_check_branch
          %242 = sbr.rel (%p240) target = $region32
        $region31: #{tpu_custom_call.1} parent=23 // pred_region
          %s243 = sand.u32 %s21, 1
          %s244 = scalar_lea.sflag [#allocation7], %s243
          %s245 = sand.u32 %s71, 1
          %s246 = smul.addr %s245, 28
          %s247 = scalar_lea.vmem [#allocation6], %s246
          %s249 = ssub.s32 448, 448
          %250 = vsyncadd %s244, %s249
          %s251 = smul.addr %s28, 7
          %s252 = smul.addr %s251, 64
          %s253 = scalar_lea.hbm %s1, %s252
          %s254 = sshll.u32 %s247, 4
          %s255 = int_to_ptr.vmem [resolvable:$true] %s254
          %260 = dma.hbm_to_vmem [thread:$0]  %s253, 448, %s255, %s244, 64, 64, 4
        $region32: #{tpu_custom_call.1} parent=23 // pred_fallthru
          _
        // Predicated region
        $region33: #{tpu_custom_call.1} parent=23 // pred_check
          %p261 = pneg %p107
        $region34: #{tpu_custom_call.1} parent=23 // pred_check_branch
          %263 = sbr.rel (%p261) target = $region36
        $region35: #{tpu_custom_call.1} parent=23 // pred_region
          %s264 = sand.u32 %s21, 1
          %s265 = scalar_lea.sflag [#allocation7], %s264
          %s266 = sand.u32 %s97, 1
          %s267 = smul.addr %s266, 28
          %s268 = scalar_lea.vmem [#allocation8], %s267
          %s270 = ssub.s32 448, 448
          %271 = vsyncadd %s265, %s270
          %s272 = smul.addr %s28, 7
          %s273 = smul.addr %s272, 64
          %s274 = scalar_lea.hbm %s2, %s273
          %s275 = sshll.u32 %s268, 4
          %s276 = int_to_ptr.vmem [resolvable:$true] %s275
          %281 = dma.hbm_to_vmem [thread:$0]  %s274, 448, %s276, %s265, 64, 64, 4
        $region36: #{tpu_custom_call.1} parent=23 // pred_fallthru
          _
      $region24: #{tpu_custom_call.1} parent=5 // pred_fallthru
        _
      %p282 = scmp.le.s32.totalorder 1, %s21
      %p283 = scmp.lt.s32.totalorder %s21, 3
      %p284 = pnand %p282, %p283
      %p285 = pneg %p284
      // Predicated region
      $region37: #{tpu_custom_call.1} parent=5 // pred_check
        _
      $region38: #{tpu_custom_call.1} parent=5 // pred_check_branch
        %287 = sbr.rel (%p284) target = $region40
      $region39: #{tpu_custom_call.1} parent=5 // pred_region
        %s288 = ssub.s32 %s21, 1
        %s289 = sand.u32 %s48, 1
        %s290 = scalar_lea.sflag [#allocation4], %s289
        %s291 = sand.u32 %s48, 1
        %s292 = smul.addr %s291, 28
        %s293 = scalar_lea.vmem [#allocation3], %s292
        // Predicated region
        $region41: #{tpu_custom_call.1} parent=39 // pred_check
          %p294 = pneg %p61
        $region42: #{tpu_custom_call.1} parent=39 // pred_check_branch
          %296 = sbr.rel (%p294) target = $region44
        $region43: #{tpu_custom_call.1} parent=39 // pred_region
          %297 = dma.done %s290, 448
        $region44: #{tpu_custom_call.1} parent=39 // pred_fallthru
          _
        %s298 = sand.u32 %s26, 1
        %s299 = scalar_lea.sflag [#allocation7], %s298
        %s300 = sand.u32 %s74, 1
        %s301 = smul.addr %s300, 28
        %s302 = scalar_lea.vmem [#allocation6], %s301
        // Predicated region
        $region45: #{tpu_custom_call.1} parent=39 // pred_check
          %p303 = pneg %p87
        $region46: #{tpu_custom_call.1} parent=39 // pred_check_branch
          %305 = sbr.rel (%p303) target = $region48
        $region47: #{tpu_custom_call.1} parent=39 // pred_region
          %306 = dma.done %s299, 448
        $region48: #{tpu_custom_call.1} parent=39 // pred_fallthru
          _
        %s307 = sand.u32 %s26, 1
        %s308 = scalar_lea.sflag [#allocation7], %s307
        %s309 = sand.u32 %s100, 1
        %s310 = smul.addr %s309, 28
        %s311 = scalar_lea.vmem [#allocation8], %s310
        // Predicated region
        $region49: #{tpu_custom_call.1} parent=39 // pred_check
          %p312 = pneg %p113
        $region50: #{tpu_custom_call.1} parent=39 // pred_check_branch
          %314 = sbr.rel (%p312) target = $region52
        $region51: #{tpu_custom_call.1} parent=39 // pred_region
          %315 = dma.done %s308, 448
        $region52: #{tpu_custom_call.1} parent=39 // pred_fallthru
          _
        // Predicated region
        $region53: #{tpu_custom_call.1} parent=39 // pred_check
          %p316 = pneg %p134
        $region54: #{tpu_custom_call.1} parent=39 // pred_check_branch
          %318 = sbr.rel (%p316) target = $region56
        $region55: #{tpu_custom_call.1} parent=39 // pred_region
          %319 = dma.done [#allocation10], 3584
        $region56: #{tpu_custom_call.1} parent=39 // pred_fallthru
          _
        %s320 = sand.u32 %s48, 1
        %s321 = scalar_lea.sflag [#allocation4], %s320
        %s322 = sand.u32 %s48, 1
        %s323 = smul.addr %s322, 28
        %s324 = scalar_lea.vmem [#allocation3], %s323
        %p325 = pneg %p61
        %p326 = pneg %p58
        %s327 = sand.u32 %s26, 1
        %s328 = scalar_lea.sflag [#allocation7], %s327
        %s329 = sand.u32 %s74, 1
        %s330 = smul.addr %s329, 28
        %s331 = scalar_lea.vmem [#allocation6], %s330
        %p332 = pneg %p87
        %p333 = pneg %p84
        %s334 = sand.u32 %s26, 1
        %s335 = scalar_lea.sflag [#allocation7], %s334
        %s336 = sand.u32 %s100, 1
        %s337 = smul.addr %s336, 28
        %s338 = scalar_lea.vmem [#allocation8], %s337
        %p339 = pneg %p113
        %p340 = pneg %p110
        %p341 = pneg %p134
        %p342 = pneg %p131
        %p343 = pneg %p155
        %p344 = pneg %p152
        %p345 = pneg %p183
        %p346 = pneg %p180
        %s347 = sand.u32 %s170, 1
        %s348 = scalar_lea.sflag [#allocation5], %s347
        %s349 = sand.u32 %s170, 1
        %s350 = smul.addr %s349, 8
        %s351 = scalar_lea.vmem [#allocation11], %s350
        %v353 = vld [vmem:[%s293] sm:$0xf]
        %v354 = vld [vmem:[%s302] sm:$0xf]
        %v355 = vld [vmem:[%s311] sm:$0xf]
        %vm356 = vcmask 523264
        %v358 = vsel %vm356, %v353, 0
        %v361 = vsel %vm356, %v354, 0
        %363 = vmatprep.subr.bf16.mxu0 0
        %364 = vmatpush1.bf16.xpose.msra.mxu0 %v361
        %365 = vmatprep.subr.bf16.mxu0 0
        %366 = vmatpush1.bf16.xpose.msra.mxu0 0
        %367 = vmatprep.subr.bf16.mxu0 0
        %368 = vmatpush1.bf16.xpose.msra.mxu0 0
        %369 = vmatprep.subr.bf16.mxu0 0
        %370 = vmatpush1.bf16.xpose.msra.mxu0 0
        %371 = vmatprep.subr.bf16.mxu0 0
        %372 = vmatpush1.bf16.xpose.msra.mxu0 0
        %373 = vmatprep.subr.bf16.mxu0 0
        %374 = vmatpush1.bf16.xpose.msra.mxu0 0
        %375 = vmatprep.subr.bf16.mxu0 0
        %376 = vmatpush1.bf16.xpose.msra.mxu0 0
        %377 = vmatprep.subr.bf16.mxu0 0
        %378 = vmatpush1.bf16.xpose.msra.mxu0 0
        %379 = vmatprep.subr.bf16.mxu0 0
        %380 = vmatpush1.bf16.xpose.msra.mxu0 0
        %381 = vmatprep.subr.bf16.mxu0 0
        %382 = vmatpush1.bf16.xpose.msra.mxu0 0
        %383 = vmatprep.subr.bf16.mxu0 0
        %384 = vmatpush1.bf16.xpose.msra.mxu0 0
        %385 = vmatprep.subr.bf16.mxu0 0
        %386 = vmatpush1.bf16.xpose.msra.mxu0 0
        %387 = vmatprep.subr.bf16.mxu0 0
        %388 = vmatpush1.bf16.xpose.msra.mxu0 0
        %389 = vmatprep.subr.bf16.mxu0 0
        %390 = vmatpush1.bf16.xpose.msra.mxu0 0
        %391 = vmatprep.subr.bf16.mxu0 0
        %392 = vmatpush1.bf16.xpose.msra.mxu0 0
        %393 = vmatprep.subr.bf16.mxu0 0
        %394 = vmatpush1.bf16.xpose.msra.mxu0 0
        %395 = vmatprep.mubr.bf16.mxu0 0
        %396 = vmatmul.mubr.bf16.gmra.mrb[0].mxu0 %v358
        %v397 = vpop.f32.mrb[0].mxu0
        %v398 = vadd.f32 0.0, %v397
        %v399 = vpop.f32.mrb[0].mxu0
        %v400 = vpop.f32.mrb[0].mxu0
        %v401 = vpop.f32.mrb[0].mxu0
        %402 = vdwg.mxu0
        %vm403 = vcmask 64512
        %v404 = vsel %vm403, %v398, -inf
        %405 = vmax.xlane.f32.xlu0 %v404
        %v406 = vpop.xlane.xlu0 %405
        %v407 = vsub.f32 %v398, %v406
        %v408 = vmul.f32 %v407, 1.442695
        %v409 = vpow.pop %v408
        %v410 = vsel %vm403, %v409, 0.0
        %411 = vadd.xlane.f32.xlu0 %v410
        %v412 = vpop.xlane.xlu0 %411
        %v413 = vpack.c.bf16 %v409, %v409
        %v415 = vsel %vm403, %v413, 0
        %vm417 = vcmask 1043456
        %v419 = vsel %vm417, %v355, 0
        %421 = vmatprep.subr.bf16.mxu0 0
        %422 = vmatpush1.bf16.msra.mxu0 %v419
        %423 = vmatprep.subr.bf16.mxu0 0
        %424 = vmatpush1.bf16.msra.mxu0 0
        %425 = vmatprep.subr.bf16.mxu0 0
        %426 = vmatpush1.bf16.msra.mxu0 0
        %427 = vmatprep.subr.bf16.mxu0 0
        %428 = vmatpush1.bf16.msra.mxu0 0
        %429 = vmatprep.subr.bf16.mxu0 0
        %430 = vmatpush1.bf16.msra.mxu0 0
        %431 = vmatprep.subr.bf16.mxu0 0
        %432 = vmatpush1.bf16.msra.mxu0 0
        %433 = vmatprep.subr.bf16.mxu0 0
        %434 = vmatpush1.bf16.msra.mxu0 0
        %435 = vmatprep.subr.bf16.mxu0 0
        %436 = vmatpush1.bf16.msra.mxu0 0
        %437 = vmatprep.subr.bf16.mxu0 0
        %438 = vmatpush1.bf16.msra.mxu0 0
        %439 = vmatprep.subr.bf16.mxu0 0
        %440 = vmatpush1.bf16.msra.mxu0 0
        %441 = vmatprep.subr.bf16.mxu0 0
        %442 = vmatpush1.bf16.msra.mxu0 0
        %443 = vmatprep.subr.bf16.mxu0 0
        %444 = vmatpush1.bf16.msra.mxu0 0
        %445 = vmatprep.subr.bf16.mxu0 0
        %446 = vmatpush1.bf16.msra.mxu0 0
        %447 = vmatprep.subr.bf16.mxu0 0
        %448 = vmatpush1.bf16.msra.mxu0 0
        %449 = vmatprep.subr.bf16.mxu0 0
        %450 = vmatpush1.bf16.msra.mxu0 0
        %451 = vmatprep.subr.bf16.mxu0 0
        %452 = vmatpush1.bf16.msra.mxu0 0
        %453 = vmatprep.mubr.bf16.mxu0 0
        %454 = vmatmul.mubr.bf16.gmra.mrb[0].mxu0 %v415
        %v455 = vpop.f32.mrb[0].mxu0
        %v456 = vadd.f32 0.0, %v455
        %v457 = vpop.f32.mrb[0].mxu0
        %v458 = vpop.f32.mrb[0].mxu0
        %v459 = vpop.f32.mrb[0].mxu0
        %460 = vdwg.mxu0
        %v461 = vrcp.pop %v412
        %v462 = vmul.f32 %v456, %v461
        %v463 = vpack.c.bf16 %v462, %v462
        %vm464 = vcmask 519168
        %465 = vst.msk [vmem:[#allocation2] sm:$0xf] %vm464, %v463
        %s466 = scalar_lea.vmem %s293, 4 [#allocation3]
        %v467 = vld [vmem:[%s466] sm:$0xf]
        %s468 = scalar_lea.vmem %s302, 4 [#allocation6]
        %v469 = vld [vmem:[%s468] sm:$0xf]
        %s470 = scalar_lea.vmem %s311, 4 [#allocation8]
        %v471 = vld [vmem:[%s470] sm:$0xf]
        %v473 = vsel %vm356, %v467, 0
        %v476 = vsel %vm356, %v469, 0
        %478 = vmatprep.subr.bf16.mxu0 0
        %479 = vmatpush1.bf16.xpose.msra.mxu0 %v476
        %480 = vmatprep.subr.bf16.mxu0 0
        %481 = vmatpush1.bf16.xpose.msra.mxu0 0
        %482 = vmatprep.subr.bf16.mxu0 0
        %483 = vmatpush1.bf16.xpose.msra.mxu0 0
        %484 = vmatprep.subr.bf16.mxu0 0
        %485 = vmatpush1.bf16.xpose.msra.mxu0 0
        %486 = vmatprep.subr.bf16.mxu0 0
        %487 = vmatpush1.bf16.xpose.msra.mxu0 0
        %488 = vmatprep.subr.bf16.mxu0 0
        %489 = vmatpush1.bf16.xpose.msra.mxu0 0
        %490 = vmatprep.subr.bf16.mxu0 0
        %491 = vmatpush1.bf16.xpose.msra.mxu0 0
        %492 = vmatprep.subr.bf16.mxu0 0
        %493 = vmatpush1.bf16.xpose.msra.mxu0 0
        %494 = vmatprep.subr.bf16.mxu0 0
        %495 = vmatpush1.bf16.xpose.msra.mxu0 0
        %496 = vmatprep.subr.bf16.mxu0 0
        %497 = vmatpush1.bf16.xpose.msra.mxu0 0
        %498 = vmatprep.subr.bf16.mxu0 0
        %499 = vmatpush1.bf16.xpose.msra.mxu0 0
        %500 = vmatprep.subr.bf16.mxu0 0
        %501 = vmatpush1.bf16.xpose.msra.mxu0 0
        %502 = vmatprep.subr.bf16.mxu0 0
        %503 = vmatpush1.bf16.xpose.msra.mxu0 0
        %504 = vmatprep.subr.bf16.mxu0 0
        %505 = vmatpush1.bf16.xpose.msra.mxu0 0
        %506 = vmatprep.subr.bf16.mxu0 0
        %507 = vmatpush1.bf16.xpose.msra.mxu0 0
        %508 = vmatprep.subr.bf16.mxu0 0
        %509 = vmatpush1.bf16.xpose.msra.mxu0 0
        %510 = vmatprep.mubr.bf16.mxu0 0
        %511 = vmatmul.mubr.bf16.gmra.mrb[0].mxu0 %v473
        %v512 = vpop.f32.mrb[0].mxu0
        %v513 = vadd.f32 0.0, %v512
        %v514 = vpop.f32.mrb[0].mxu0
        %v515 = vpop.f32.mrb[0].mxu0
        %v516 = vpop.f32.mrb[0].mxu0
        %517 = vdwg.mxu0
        %v518 = vsel %vm403, %v513, -inf
        %519 = vmax.xlane.f32.xlu0 %v518
        %v520 = vpop.xlane.xlu0 %519
        %v521 = vsub.f32 %v513, %v520
        %v522 = vmul.f32 %v521, 1.442695
        %v523 = vpow.pop %v522
        %v524 = vsel %vm403, %v523, 0.0
        %525 = vadd.xlane.f32.xlu0 %v524
        %v526 = vpop.xlane.xlu0 %525
        %v527 = vpack.c.bf16 %v523, %v523
        %v529 = vsel %vm403, %v527, 0
        %v532 = vsel %vm417, %v471, 0
        %534 = vmatprep.subr.bf16.mxu0 0
        %535 = vmatpush1.bf16.msra.mxu0 %v532
        %536 = vmatprep.subr.bf16.mxu0 0
        %537 = vmatpush1.bf16.msra.mxu0 0
        %538 = vmatprep.subr.bf16.mxu0 0
        %539 = vmatpush1.bf16.msra.mxu0 0
        %540 = vmatprep.subr.bf16.mxu0 0
        %541 = vmatpush1.bf16.msra.mxu0 0
        %542 = vmatprep.subr.bf16.mxu0 0
        %543 = vmatpush1.bf16.msra.mxu0 0
        %544 = vmatprep.subr.bf16.mxu0 0
        %545 = vmatpush1.bf16.msra.mxu0 0
        %546 = vmatprep.subr.bf16.mxu0 0
        %547 = vmatpush1.bf16.msra.mxu0 0
        %548 = vmatprep.subr.bf16.mxu0 0
        %549 = vmatpush1.bf16.msra.mxu0 0
        %550 = vmatprep.subr.bf16.mxu0 0
        %551 = vmatpush1.bf16.msra.mxu0 0
        %552 = vmatprep.subr.bf16.mxu0 0
        %553 = vmatpush1.bf16.msra.mxu0 0
        %554 = vmatprep.subr.bf16.mxu0 0
        %555 = vmatpush1.bf16.msra.mxu0 0
        %556 = vmatprep.subr.bf16.mxu0 0
        %557 = vmatpush1.bf16.msra.mxu0 0
        %558 = vmatprep.subr.bf16.mxu0 0
        %559 = vmatpush1.bf16.msra.mxu0 0
        %560 = vmatprep.subr.bf16.mxu0 0
        %561 = vmatpush1.bf16.msra.mxu0 0
        %562 = vmatprep.subr.bf16.mxu0 0
        %563 = vmatpush1.bf16.msra.mxu0 0
        %564 = vmatprep.subr.bf16.mxu0 0
        %565 = vmatpush1.bf16.msra.mxu0 0
        %566 = vmatprep.mubr.bf16.mxu0 0
        %567 = vmatmul.mubr.bf16.gmra.mrb[0].mxu0 %v529
        %v568 = vpop.f32.mrb[0].mxu0
        %v569 = vadd.f32 0.0, %v568
        %v570 = vpop.f32.mrb[0].mxu0
        %v571 = vpop.f32.mrb[0].mxu0
        %v572 = vpop.f32.mrb[0].mxu0
        %573 = vdwg.mxu0
        %v574 = vrcp.pop %v526
        %v575 = vmul.f32 %v569, %v574
        %v576 = vpack.c.bf16 %v575, %v575
        %v578 = vunpack.c.l.b16 %v576
        %v579 = vpack.c.b16 %v578, %v578
        %580 = vrot.lane.b32.xlu0 %v579, 64
        %v581 = vpop.permute.xlu0 %580
        %vm583 = vcmask 1043968
        %584 = vst.msk [vmem:[#allocation2] sm:$0xf] %vm583, %v581
        %s585 = scalar_lea.vmem %s293, 8 [#allocation3]
        %v586 = vld [vmem:[%s585] sm:$0xf]
        %s587 = scalar_lea.vmem %s302, 8 [#allocation6]
        %v588 = vld [vmem:[%s587] sm:$0xf]
        %s589 = scalar_lea.vmem %s311, 8 [#allocation8]
        %v590 = vld [vmem:[%s589] sm:$0xf]
        %v592 = vsel %vm356, %v586, 0
        %v595 = vsel %vm356, %v588, 0
        %597 = vmatprep.subr.bf16.mxu0 0
        %598 = vmatpush1.bf16.xpose.msra.mxu0 %v595
        %599 = vmatprep.subr.bf16.mxu0 0
        %600 = vmatpush1.bf16.xpose.msra.mxu0 0
        %601 = vmatprep.subr.bf16.mxu0 0
        %602 = vmatpush1.bf16.xpose.msra.mxu0 0
        %603 = vmatprep.subr.bf16.mxu0 0
        %604 = vmatpush1.bf16.xpose.msra.mxu0 0
        %605 = vmatprep.subr.bf16.mxu0 0
        %606 = vmatpush1.bf16.xpose.msra.mxu0 0
        %607 = vmatprep.subr.bf16.mxu0 0
        %608 = vmatpush1.bf16.xpose.msra.mxu0 0
        %609 = vmatprep.subr.bf16.mxu0 0
        %610 = vmatpush1.bf16.xpose.msra.mxu0 0
        %611 = vmatprep.subr.bf16.mxu0 0
        %612 = vmatpush1.bf16.xpose.msra.mxu0 0
        %613 = vmatprep.subr.bf16.mxu0 0
        %614 = vmatpush1.bf16.xpose.msra.mxu0 0
        %615 = vmatprep.subr.bf16.mxu0 0
        %616 = vmatpush1.bf16.xpose.msra.mxu0 0
        %617 = vmatprep.subr.bf16.mxu0 0
        %618 = vmatpush1.bf16.xpose.msra.mxu0 0
        %619 = vmatprep.subr.bf16.mxu0 0
        %620 = vmatpush1.bf16.xpose.msra.mxu0 0
        %621 = vmatprep.subr.bf16.mxu0 0
        %622 = vmatpush1.bf16.xpose.msra.mxu0 0
        %623 = vmatprep.subr.bf16.mxu0 0
        %624 = vmatpush1.bf16.xpose.msra.mxu0 0
        %625 = vmatprep.subr.bf16.mxu0 0
        %626 = vmatpush1.bf16.xpose.msra.mxu0 0
        %627 = vmatprep.subr.bf16.mxu0 0
        %628 = vmatpush1.bf16.xpose.msra.mxu0 0
        %629 = vmatprep.mubr.bf16.mxu0 0
        %630 = vmatmul.mubr.bf16.gmra.mrb[0].mxu0 %v592
        %v631 = vpop.f32.mrb[0].mxu0
        %v632 = vadd.f32 0.0, %v631
        %v633 = vpop.f32.mrb[0].mxu0
        %v634 = vpop.f32.mrb[0].mxu0
        %v635 = vpop.f32.mrb[0].mxu0
        %636 = vdwg.mxu0
        %v637 = vsel %vm403, %v632, -inf
        %638 = vmax.xlane.f32.xlu0 %v637
        %v639 = vpop.xlane.xlu0 %638
        %v640 = vsub.f32 %v632, %v639
        %v641 = vmul.f32 %v640, 1.442695
        %v642 = vpow.pop %v641
        %v643 = vsel %vm403, %v642, 0.0
        %644 = vadd.xlane.f32.xlu0 %v643
        %v645 = vpop.xlane.xlu0 %644
        %v646 = vpack.c.bf16 %v642, %v642
        %v648 = vsel %vm403, %v646, 0
        %v651 = vsel %vm417, %v590, 0
        %653 = vmatprep.subr.bf16.mxu0 0
        %654 = vmatpush1.bf16.msra.mxu0 %v651
        %655 = vmatprep.subr.bf16.mxu0 0
        %656 = vmatpush1.bf16.msra.mxu0 0
        %657 = vmatprep.subr.bf16.mxu0 0
        %658 = vmatpush1.bf16.msra.mxu0 0
        %659 = vmatprep.subr.bf16.mxu0 0
        %660 = vmatpush1.bf16.msra.mxu0 0
        %661 = vmatprep.subr.bf16.mxu0 0
        %662 = vmatpush1.bf16.msra.mxu0 0
        %663 = vmatprep.subr.bf16.mxu0 0
        %664 = vmatpush1.bf16.msra.mxu0 0
        %665 = vmatprep.subr.bf16.mxu0 0
        %666 = vmatpush1.bf16.msra.mxu0 0
        %667 = vmatprep.subr.bf16.mxu0 0
        %668 = vmatpush1.bf16.msra.mxu0 0
        %669 = vmatprep.subr.bf16.mxu0 0
        %670 = vmatpush1.bf16.msra.mxu0 0
        %671 = vmatprep.subr.bf16.mxu0 0
        %672 = vmatpush1.bf16.msra.mxu0 0
        %673 = vmatprep.subr.bf16.mxu0 0
        %674 = vmatpush1.bf16.msra.mxu0 0
        %675 = vmatprep.subr.bf16.mxu0 0
        %676 = vmatpush1.bf16.msra.mxu0 0
        %677 = vmatprep.subr.bf16.mxu0 0
        %678 = vmatpush1.bf16.msra.mxu0 0
        %679 = vmatprep.subr.bf16.mxu0 0
        %680 = vmatpush1.bf16.msra.mxu0 0
        %681 = vmatprep.subr.bf16.mxu0 0
        %682 = vmatpush1.bf16.msra.mxu0 0
        %683 = vmatprep.subr.bf16.mxu0 0
        %684 = vmatpush1.bf16.msra.mxu0 0
        %685 = vmatprep.mubr.bf16.mxu0 0
        %686 = vmatmul.mubr.bf16.gmra.mrb[0].mxu0 %v648
        %v687 = vpop.f32.mrb[0].mxu0
        %v688 = vadd.f32 0.0, %v687
        %v689 = vpop.f32.mrb[0].mxu0
        %v690 = vpop.f32.mrb[0].mxu0
        %v691 = vpop.f32.mrb[0].mxu0
        %692 = vdwg.mxu0
        %v693 = vrcp.pop %v645
        %v694 = vmul.f32 %v688, %v693
        %v695 = vpack.c.bf16 %v694, %v694
        %696 = vst.msk [vmem:[#allocation2 + $0x4] sm:$0xf] %vm464, %v695
        %s697 = scalar_lea.vmem %s293, 12 [#allocation3]
        %v698 = vld [vmem:[%s697] sm:$0xf]
        %s699 = scalar_lea.vmem %s302, 12 [#allocation6]
        %v700 = vld [vmem:[%s699] sm:$0xf]
        %s701 = scalar_lea.vmem %s311, 12 [#allocation8]
        %v702 = vld [vmem:[%s701] sm:$0xf]
        %v704 = vsel %vm356, %v698, 0
        %v707 = vsel %vm356, %v700, 0
        %709 = vmatprep.subr.bf16.mxu0 0
        %710 = vmatpush1.bf16.xpose.msra.mxu0 %v707
        %711 = vmatprep.subr.bf16.mxu0 0
        %712 = vmatpush1.bf16.xpose.msra.mxu0 0
        %713 = vmatprep.subr.bf16.mxu0 0
        %714 = vmatpush1.bf16.xpose.msra.mxu0 0
        %715 = vmatprep.subr.bf16.mxu0 0
        %716 = vmatpush1.bf16.xpose.msra.mxu0 0
        %717 = vmatprep.subr.bf16.mxu0 0
        %718 = vmatpush1.bf16.xpose.msra.mxu0 0
        %719 = vmatprep.subr.bf16.mxu0 0
        %720 = vmatpush1.bf16.xpose.msra.mxu0 0
        %721 = vmatprep.subr.bf16.mxu0 0
        %722 = vmatpush1.bf16.xpose.msra.mxu0 0
        %723 = vmatprep.subr.bf16.mxu0 0
        %724 = vmatpush1.bf16.xpose.msra.mxu0 0
        %725 = vmatprep.subr.bf16.mxu0 0
        %726 = vmatpush1.bf16.xpose.msra.mxu0 0
        %727 = vmatprep.subr.bf16.mxu0 0
        %728 = vmatpush1.bf16.xpose.msra.mxu0 0
        %729 = vmatprep.subr.bf16.mxu0 0
        %730 = vmatpush1.bf16.xpose.msra.mxu0 0
        %731 = vmatprep.subr.bf16.mxu0 0
        %732 = vmatpush1.bf16.xpose.msra.mxu0 0
        %733 = vmatprep.subr.bf16.mxu0 0
        %734 = vmatpush1.bf16.xpose.msra.mxu0 0
        %735 = vmatprep.subr.bf16.mxu0 0
        %736 = vmatpush1.bf16.xpose.msra.mxu0 0
        %737 = vmatprep.subr.bf16.mxu0 0
        %738 = vmatpush1.bf16.xpose.msra.mxu0 0
        %739 = vmatprep.subr.bf16.mxu0 0
        %740 = vmatpush1.bf16.xpose.msra.mxu0 0
        %741 = vmatprep.mubr.bf16.mxu0 0
        %742 = vmatmul.mubr.bf16.gmra.mrb[0].mxu0 %v704
        %v743 = vpop.f32.mrb[0].mxu0
        %v744 = vadd.f32 0.0, %v743
        %v745 = vpop.f32.mrb[0].mxu0
        %v746 = vpop.f32.mrb[0].mxu0
        %v747 = vpop.f32.mrb[0].mxu0
        %748 = vdwg.mxu0
        %v749 = vsel %vm403, %v744, -inf
        %750 = vmax.xlane.f32.xlu0 %v749
        %v751 = vpop.xlane.xlu0 %750
        %v752 = vsub.f32 %v744, %v751
        %v753 = vmul.f32 %v752, 1.442695
        %v754 = vpow.pop %v753
        %v755 = vsel %vm403, %v754, 0.0
        %756 = vadd.xlane.f32.xlu0 %v755
        %v757 = vpop.xlane.xlu0 %756
        %v758 = vpack.c.bf16 %v754, %v754
        %v760 = vsel %vm403, %v758, 0
        %v763 = vsel %vm417, %v702, 0
        %765 = vmatprep.subr.bf16.mxu0 0
        %766 = vmatpush1.bf16.msra.mxu0 %v763
        %767 = vmatprep.subr.bf16.mxu0 0
        %768 = vmatpush1.bf16.msra.mxu0 0
        %769 = vmatprep.subr.bf16.mxu0 0
        %770 = vmatpush1.bf16.msra.mxu0 0
        %771 = vmatprep.subr.bf16.mxu0 0
        %772 = vmatpush1.bf16.msra.mxu0 0
        %773 = vmatprep.subr.bf16.mxu0 0
        %774 = vmatpush1.bf16.msra.mxu0 0
        %775 = vmatprep.subr.bf16.mxu0 0
        %776 = vmatpush1.bf16.msra.mxu0 0
        %777 = vmatprep.subr.bf16.mxu0 0
        %778 = vmatpush1.bf16.msra.mxu0 0
        %779 = vmatprep.subr.bf16.mxu0 0
        %780 = vmatpush1.bf16.msra.mxu0 0
        %781 = vmatprep.subr.bf16.mxu0 0
        %782 = vmatpush1.bf16.msra.mxu0 0
        %783 = vmatprep.subr.bf16.mxu0 0
        %784 = vmatpush1.bf16.msra.mxu0 0
        %785 = vmatprep.subr.bf16.mxu0 0
        %786 = vmatpush1.bf16.msra.mxu0 0
        %787 = vmatprep.subr.bf16.mxu0 0
        %788 = vmatpush1.bf16.msra.mxu0 0
        %789 = vmatprep.subr.bf16.mxu0 0
        %790 = vmatpush1.bf16.msra.mxu0 0
        %791 = vmatprep.subr.bf16.mxu0 0
        %792 = vmatpush1.bf16.msra.mxu0 0
        %793 = vmatprep.subr.bf16.mxu0 0
        %794 = vmatpush1.bf16.msra.mxu0 0
        %795 = vmatprep.subr.bf16.mxu0 0
        %796 = vmatpush1.bf16.msra.mxu0 0
        %797 = vmatprep.mubr.bf16.mxu0 0
        %798 = vmatmul.mubr.bf16.gmra.mrb[0].mxu0 %v760
        %v799 = vpop.f32.mrb[0].mxu0
        %v800 = vadd.f32 0.0, %v799
        %v801 = vpop.f32.mrb[0].mxu0
        %v802 = vpop.f32.mrb[0].mxu0
        %v803 = vpop.f32.mrb[0].mxu0
        %804 = vdwg.mxu0
        %v805 = vrcp.pop %v757
        %v806 = vmul.f32 %v800, %v805
        %v807 = vpack.c.bf16 %v806, %v806
        %v809 = vunpack.c.l.b16 %v807
        %v810 = vpack.c.b16 %v809, %v809
        %811 = vrot.lane.b32.xlu0 %v810, 64
        %v812 = vpop.permute.xlu0 %811
        %814 = vst.msk [vmem:[#allocation2 + $0x4] sm:$0xf] %vm583, %v812
        %s815 = scalar_lea.vmem %s293, 16 [#allocation3]
        %v816 = vld [vmem:[%s815] sm:$0xf]
        %s817 = scalar_lea.vmem %s302, 16 [#allocation6]
        %v818 = vld [vmem:[%s817] sm:$0xf]
        %s819 = scalar_lea.vmem %s311, 16 [#allocation8]
        %v820 = vld [vmem:[%s819] sm:$0xf]
        %v822 = vsel %vm356, %v816, 0
        %v825 = vsel %vm356, %v818, 0
        %827 = vmatprep.subr.bf16.mxu0 0
        %828 = vmatpush1.bf16.xpose.msra.mxu0 %v825
        %829 = vmatprep.subr.bf16.mxu0 0
        %830 = vmatpush1.bf16.xpose.msra.mxu0 0
        %831 = vmatprep.subr.bf16.mxu0 0
        %832 = vmatpush1.bf16.xpose.msra.mxu0 0
        %833 = vmatprep.subr.bf16.mxu0 0
        %834 = vmatpush1.bf16.xpose.msra.mxu0 0
        %835 = vmatprep.subr.bf16.mxu0 0
        %836 = vmatpush1.bf16.xpose.msra.mxu0 0
        %837 = vmatprep.subr.bf16.mxu0 0
        %838 = vmatpush1.bf16.xpose.msra.mxu0 0
        %839 = vmatprep.subr.bf16.mxu0 0
        %840 = vmatpush1.bf16.xpose.msra.mxu0 0
        %841 = vmatprep.subr.bf16.mxu0 0
        %842 = vmatpush1.bf16.xpose.msra.mxu0 0
        %843 = vmatprep.subr.bf16.mxu0 0
        %844 = vmatpush1.bf16.xpose.msra.mxu0 0
        %845 = vmatprep.subr.bf16.mxu0 0
        %846 = vmatpush1.bf16.xpose.msra.mxu0 0
        %847 = vmatprep.subr.bf16.mxu0 0
        %848 = vmatpush1.bf16.xpose.msra.mxu0 0
        %849 = vmatprep.subr.bf16.mxu0 0
        %850 = vmatpush1.bf16.xpose.msra.mxu0 0
        %851 = vmatprep.subr.bf16.mxu0 0
        %852 = vmatpush1.bf16.xpose.msra.mxu0 0
        %853 = vmatprep.subr.bf16.mxu0 0
        %854 = vmatpush1.bf16.xpose.msra.mxu0 0
        %855 = vmatprep.subr.bf16.mxu0 0
        %856 = vmatpush1.bf16.xpose.msra.mxu0 0
        %857 = vmatprep.subr.bf16.mxu0 0
        %858 = vmatpush1.bf16.xpose.msra.mxu0 0
        %859 = vmatprep.mubr.bf16.mxu0 0
        %860 = vmatmul.mubr.bf16.gmra.mrb[0].mxu0 %v822
        %v861 = vpop.f32.mrb[0].mxu0
        %v862 = vadd.f32 0.0, %v861
        %v863 = vpop.f32.mrb[0].mxu0
        %v864 = vpop.f32.mrb[0].mxu0
        %v865 = vpop.f32.mrb[0].mxu0
        %866 = vdwg.mxu0
        %v867 = vsel %vm403, %v862, -inf
        %868 = vmax.xlane.f32.xlu0 %v867
        %v869 = vpop.xlane.xlu0 %868
        %v870 = vsub.f32 %v862, %v869
        %v871 = vmul.f32 %v870, 1.442695
        %v872 = vpow.pop %v871
        %v873 = vsel %vm403, %v872, 0.0
        %874 = vadd.xlane.f32.xlu0 %v873
        %v875 = vpop.xlane.xlu0 %874
        %v876 = vpack.c.bf16 %v872, %v872
        %v878 = vsel %vm403, %v876, 0
        %v881 = vsel %vm417, %v820, 0
        %883 = vmatprep.subr.bf16.mxu0 0
        %884 = vmatpush1.bf16.msra.mxu0 %v881
        %885 = vmatprep.subr.bf16.mxu0 0
        %886 = vmatpush1.bf16.msra.mxu0 0
        %887 = vmatprep.subr.bf16.mxu0 0
        %888 = vmatpush1.bf16.msra.mxu0 0
        %889 = vmatprep.subr.bf16.mxu0 0
        %890 = vmatpush1.bf16.msra.mxu0 0
        %891 = vmatprep.subr.bf16.mxu0 0
        %892 = vmatpush1.bf16.msra.mxu0 0
        %893 = vmatprep.subr.bf16.mxu0 0
        %894 = vmatpush1.bf16.msra.mxu0 0
        %895 = vmatprep.subr.bf16.mxu0 0
        %896 = vmatpush1.bf16.msra.mxu0 0
        %897 = vmatprep.subr.bf16.mxu0 0
        %898 = vmatpush1.bf16.msra.mxu0 0
        %899 = vmatprep.subr.bf16.mxu0 0
        %900 = vmatpush1.bf16.msra.mxu0 0
        %901 = vmatprep.subr.bf16.mxu0 0
        %902 = vmatpush1.bf16.msra.mxu0 0
        %903 = vmatprep.subr.bf16.mxu0 0
        %904 = vmatpush1.bf16.msra.mxu0 0
        %905 = vmatprep.subr.bf16.mxu0 0
        %906 = vmatpush1.bf16.msra.mxu0 0
        %907 = vmatprep.subr.bf16.mxu0 0
        %908 = vmatpush1.bf16.msra.mxu0 0
        %909 = vmatprep.subr.bf16.mxu0 0
        %910 = vmatpush1.bf16.msra.mxu0 0
        %911 = vmatprep.subr.bf16.mxu0 0
        %912 = vmatpush1.bf16.msra.mxu0 0
        %913 = vmatprep.subr.bf16.mxu0 0
        %914 = vmatpush1.bf16.msra.mxu0 0
        %915 = vmatprep.mubr.bf16.mxu0 0
        %916 = vmatmul.mubr.bf16.gmra.mrb[0].mxu0 %v878
        %v917 = vpop.f32.mrb[0].mxu0
        %v918 = vadd.f32 0.0, %v917
        %v919 = vpop.f32.mrb[0].mxu0
        %v920 = vpop.f32.mrb[0].mxu0
        %v921 = vpop.f32.mrb[0].mxu0
        %922 = vdwg.mxu0
        %v923 = vrcp.pop %v875
        %v924 = vmul.f32 %v918, %v923
        %v925 = vpack.c.bf16 %v924, %v924
        %926 = vst.msk [vmem:[#allocation2 + $0x8] sm:$0xf] %vm464, %v925
        %s927 = scalar_lea.vmem %s293, 20 [#allocation3]
        %v928 = vld [vmem:[%s927] sm:$0xf]
        %s929 = scalar_lea.vmem %s302, 20 [#allocation6]
        %v930 = vld [vmem:[%s929] sm:$0xf]
        %s931 = scalar_lea.vmem %s311, 20 [#allocation8]
        %v932 = vld [vmem:[%s931] sm:$0xf]
        %v934 = vsel %vm356, %v928, 0
        %v937 = vsel %vm356, %v930, 0
        %939 = vmatprep.subr.bf16.mxu0 0
        %940 = vmatpush1.bf16.xpose.msra.mxu0 %v937
        %941 = vmatprep.subr.bf16.mxu0 0
        %942 = vmatpush1.bf16.xpose.msra.mxu0 0
        %943 = vmatprep.subr.bf16.mxu0 0
        %944 = vmatpush1.bf16.xpose.msra.mxu0 0
        %945 = vmatprep.subr.bf16.mxu0 0
        %946 = vmatpush1.bf16.xpose.msra.mxu0 0
        %947 = vmatprep.subr.bf16.mxu0 0
        %948 = vmatpush1.bf16.xpose.msra.mxu0 0
        %949 = vmatprep.subr.bf16.mxu0 0
        %950 = vmatpush1.bf16.xpose.msra.mxu0 0
        %951 = vmatprep.subr.bf16.mxu0 0
        %952 = vmatpush1.bf16.xpose.msra.mxu0 0
        %953 = vmatprep.subr.bf16.mxu0 0
        %954 = vmatpush1.bf16.xpose.msra.mxu0 0
        %955 = vmatprep.subr.bf16.mxu0 0
        %956 = vmatpush1.bf16.xpose.msra.mxu0 0
        %957 = vmatprep.subr.bf16.mxu0 0
        %958 = vmatpush1.bf16.xpose.msra.mxu0 0
        %959 = vmatprep.subr.bf16.mxu0 0
        %960 = vmatpush1.bf16.xpose.msra.mxu0 0
        %961 = vmatprep.subr.bf16.mxu0 0
        %962 = vmatpush1.bf16.xpose.msra.mxu0 0
        %963 = vmatprep.subr.bf16.mxu0 0
        %964 = vmatpush1.bf16.xpose.msra.mxu0 0
        %965 = vmatprep.subr.bf16.mxu0 0
        %966 = vmatpush1.bf16.xpose.msra.mxu0 0
        %967 = vmatprep.subr.bf16.mxu0 0
        %968 = vmatpush1.bf16.xpose.msra.mxu0 0
        %969 = vmatprep.subr.bf16.mxu0 0
        %970 = vmatpush1.bf16.xpose.msra.mxu0 0
        %971 = vmatprep.mubr.bf16.mxu0 0
        %972 = vmatmul.mubr.bf16.gmra.mrb[0].mxu0 %v934
        %v973 = vpop.f32.mrb[0].mxu0
        %v974 = vadd.f32 0.0, %v973
        %v975 = vpop.f32.mrb[0].mxu0
        %v976 = vpop.f32.mrb[0].mxu0
        %v977 = vpop.f32.mrb[0].mxu0
        %978 = vdwg.mxu0
        %v979 = vsel %vm403, %v974, -inf
        %980 = vmax.xlane.f32.xlu0 %v979
        %v981 = vpop.xlane.xlu0 %980
        %v982 = vsub.f32 %v974, %v981
        %v983 = vmul.f32 %v982, 1.442695
        %v984 = vpow.pop %v983
        %v985 = vsel %vm403, %v984, 0.0
        %986 = vadd.xlane.f32.xlu0 %v985
        %v987 = vpop.xlane.xlu0 %986
        %v988 = vpack.c.bf16 %v984, %v984
        %v990 = vsel %vm403, %v988, 0
        %v993 = vsel %vm417, %v932, 0
        %995 = vmatprep.subr.bf16.mxu0 0
        %996 = vmatpush1.bf16.msra.mxu0 %v993
        %997 = vmatprep.subr.bf16.mxu0 0
        %998 = vmatpush1.bf16.msra.mxu0 0
        %999 = vmatprep.subr.bf16.mxu0 0
        %1000 = vmatpush1.bf16.msra.mxu0 0
        %1001 = vmatprep.subr.bf16.mxu0 0
        %1002 = vmatpush1.bf16.msra.mxu0 0
        %1003 = vmatprep.subr.bf16.mxu0 0
        %1004 = vmatpush1.bf16.msra.mxu0 0
        %1005 = vmatprep.subr.bf16.mxu0 0
        %1006 = vmatpush1.bf16.msra.mxu0 0
        %1007 = vmatprep.subr.bf16.mxu0 0
        %1008 = vmatpush1.bf16.msra.mxu0 0
        %1009 = vmatprep.subr.bf16.mxu0 0
        %1010 = vmatpush1.bf16.msra.mxu0 0
        %1011 = vmatprep.subr.bf16.mxu0 0
        %1012 = vmatpush1.bf16.msra.mxu0 0
        %1013 = vmatprep.subr.bf16.mxu0 0
        %1014 = vmatpush1.bf16.msra.mxu0 0
        %1015 = vmatprep.subr.bf16.mxu0 0
        %1016 = vmatpush1.bf16.msra.mxu0 0
        %1017 = vmatprep.subr.bf16.mxu0 0
        %1018 = vmatpush1.bf16.msra.mxu0 0
        %1019 = vmatprep.subr.bf16.mxu0 0
        %1020 = vmatpush1.bf16.msra.mxu0 0
        %1021 = vmatprep.subr.bf16.mxu0 0
        %1022 = vmatpush1.bf16.msra.mxu0 0
        %1023 = vmatprep.subr.bf16.mxu0 0
        %1024 = vmatpush1.bf16.msra.mxu0 0
        %1025 = vmatprep.subr.bf16.mxu0 0
        %1026 = vmatpush1.bf16.msra.mxu0 0
        %1027 = vmatprep.mubr.bf16.mxu0 0
        %1028 = vmatmul.mubr.bf16.gmra.mrb[0].mxu0 %v990
        %v1029 = vpop.f32.mrb[0].mxu0
        %v1030 = vadd.f32 0.0, %v1029
        %v1031 = vpop.f32.mrb[0].mxu0
        %v1032 = vpop.f32.mrb[0].mxu0
        %v1033 = vpop.f32.mrb[0].mxu0
        %1034 = vdwg.mxu0
        %v1035 = vrcp.pop %v987
        %v1036 = vmul.f32 %v1030, %v1035
        %v1037 = vpack.c.bf16 %v1036, %v1036
        %v1039 = vunpack.c.l.b16 %v1037
        %v1040 = vpack.c.b16 %v1039, %v1039
        %1041 = vrot.lane.b32.xlu0 %v1040, 64
        %v1042 = vpop.permute.xlu0 %1041
        %1044 = vst.msk [vmem:[#allocation2 + $0x8] sm:$0xf] %vm583, %v1042
        %s1045 = scalar_lea.vmem %s293, 24 [#allocation3]
        %v1046 = vld [vmem:[%s1045] sm:$0xf]
        %s1047 = scalar_lea.vmem %s302, 24 [#allocation6]
        %v1048 = vld [vmem:[%s1047] sm:$0xf]
        %s1049 = scalar_lea.vmem %s311, 24 [#allocation8]
        %v1050 = vld [vmem:[%s1049] sm:$0xf]
        %v1052 = vsel %vm356, %v1046, 0
        %v1055 = vsel %vm356, %v1048, 0
        %1057 = vmatprep.subr.bf16.mxu0 0
        %1058 = vmatpush1.bf16.xpose.msra.mxu0 %v1055
        %1059 = vmatprep.subr.bf16.mxu0 0
        %1060 = vmatpush1.bf16.xpose.msra.mxu0 0
        %1061 = vmatprep.subr.bf16.mxu0 0
        %1062 = vmatpush1.bf16.xpose.msra.mxu0 0
        %1063 = vmatprep.subr.bf16.mxu0 0
        %1064 = vmatpush1.bf16.xpose.msra.mxu0 0
        %1065 = vmatprep.subr.bf16.mxu0 0
        %1066 = vmatpush1.bf16.xpose.msra.mxu0 0
        %1067 = vmatprep.subr.bf16.mxu0 0
        %1068 = vmatpush1.bf16.xpose.msra.mxu0 0
        %1069 = vmatprep.subr.bf16.mxu0 0
        %1070 = vmatpush1.bf16.xpose.msra.mxu0 0
        %1071 = vmatprep.subr.bf16.mxu0 0
        %1072 = vmatpush1.bf16.xpose.msra.mxu0 0
        %1073 = vmatprep.subr.bf16.mxu0 0
        %1074 = vmatpush1.bf16.xpose.msra.mxu0 0
        %1075 = vmatprep.subr.bf16.mxu0 0
        %1076 = vmatpush1.bf16.xpose.msra.mxu0 0
        %1077 = vmatprep.subr.bf16.mxu0 0
        %1078 = vmatpush1.bf16.xpose.msra.mxu0 0
        %1079 = vmatprep.subr.bf16.mxu0 0
        %1080 = vmatpush1.bf16.xpose.msra.mxu0 0
        %1081 = vmatprep.subr.bf16.mxu0 0
        %1082 = vmatpush1.bf16.xpose.msra.mxu0 0
        %1083 = vmatprep.subr.bf16.mxu0 0
        %1084 = vmatpush1.bf16.xpose.msra.mxu0 0
        %1085 = vmatprep.subr.bf16.mxu0 0
        %1086 = vmatpush1.bf16.xpose.msra.mxu0 0
        %1087 = vmatprep.subr.bf16.mxu0 0
        %1088 = vmatpush1.bf16.xpose.msra.mxu0 0
        %1089 = vmatprep.mubr.bf16.mxu0 0
        %1090 = vmatmul.mubr.bf16.gmra.mrb[0].mxu0 %v1052
        %v1091 = vpop.f32.mrb[0].mxu0
        %v1092 = vadd.f32 0.0, %v1091
        %v1093 = vpop.f32.mrb[0].mxu0
        %v1094 = vpop.f32.mrb[0].mxu0
        %v1095 = vpop.f32.mrb[0].mxu0
        %1096 = vdwg.mxu0
        %v1097 = vsel %vm403, %v1092, -inf
        %1098 = vmax.xlane.f32.xlu0 %v1097
        %v1099 = vpop.xlane.xlu0 %1098
        %v1100 = vsub.f32 %v1092, %v1099
        %v1101 = vmul.f32 %v1100, 1.442695
        %v1102 = vpow.pop %v1101
        %v1103 = vsel %vm403, %v1102, 0.0
        %1104 = vadd.xlane.f32.xlu0 %v1103
        %v1105 = vpop.xlane.xlu0 %1104
        %v1106 = vpack.c.bf16 %v1102, %v1102
        %v1108 = vsel %vm403, %v1106, 0
        %v1111 = vsel %vm417, %v1050, 0
        %1113 = vmatprep.subr.bf16.mxu0 0
        %1114 = vmatpush1.bf16.msra.mxu0 %v1111
        %1115 = vmatprep.subr.bf16.mxu0 0
        %1116 = vmatpush1.bf16.msra.mxu0 0
        %1117 = vmatprep.subr.bf16.mxu0 0
        %1118 = vmatpush1.bf16.msra.mxu0 0
        %1119 = vmatprep.subr.bf16.mxu0 0
        %1120 = vmatpush1.bf16.msra.mxu0 0
        %1121 = vmatprep.subr.bf16.mxu0 0
        %1122 = vmatpush1.bf16.msra.mxu0 0
        %1123 = vmatprep.subr.bf16.mxu0 0
        %1124 = vmatpush1.bf16.msra.mxu0 0
        %1125 = vmatprep.subr.bf16.mxu0 0
        %1126 = vmatpush1.bf16.msra.mxu0 0
        %1127 = vmatprep.subr.bf16.mxu0 0
        %1128 = vmatpush1.bf16.msra.mxu0 0
        %1129 = vmatprep.subr.bf16.mxu0 0
        %1130 = vmatpush1.bf16.msra.mxu0 0
        %1131 = vmatprep.subr.bf16.mxu0 0
        %1132 = vmatpush1.bf16.msra.mxu0 0
        %1133 = vmatprep.subr.bf16.mxu0 0
        %1134 = vmatpush1.bf16.msra.mxu0 0
        %1135 = vmatprep.subr.bf16.mxu0 0
        %1136 = vmatpush1.bf16.msra.mxu0 0
        %1137 = vmatprep.subr.bf16.mxu0 0
        %1138 = vmatpush1.bf16.msra.mxu0 0
        %1139 = vmatprep.subr.bf16.mxu0 0
        %1140 = vmatpush1.bf16.msra.mxu0 0
        %1141 = vmatprep.subr.bf16.mxu0 0
        %1142 = vmatpush1.bf16.msra.mxu0 0
        %1143 = vmatprep.subr.bf16.mxu0 0
        %1144 = vmatpush1.bf16.msra.mxu0 0
        %1145 = vmatprep.mubr.bf16.mxu0 0
        %1146 = vmatmul.mubr.bf16.gmra.mrb[0].mxu0 %v1108
        %v1147 = vpop.f32.mrb[0].mxu0
        %v1148 = vadd.f32 0.0, %v1147
        %v1149 = vpop.f32.mrb[0].mxu0
        %v1150 = vpop.f32.mrb[0].mxu0
        %v1151 = vpop.f32.mrb[0].mxu0
        %1152 = vdwg.mxu0
        %v1153 = vrcp.pop %v1105
        %v1154 = vmul.f32 %v1148, %v1153
        %v1155 = vpack.c.bf16 %v1154, %v1154
        %1156 = vst.msk [vmem:[#allocation2 + $0xc] sm:$0xf] %vm464, %v1155
        %v1157 = vld [vmem:[#allocation2] sm:$0xff]
        %v1158 = vld [vmem:[#allocation2 + $0x8] sm:$0xff]
        %v1159 = vld [vmem:[#allocation9] sm:$0xf]
        %v1160 = vld [vmem:[#allocation9 + $0x4] sm:$0xf]
        %v1161 = vld [vmem:[#allocation9 + $0x8] sm:$0xf]
        %v1162 = vld [vmem:[#allocation9 + $0xc] sm:$0xf]
        %v1163 = vld [vmem:[#allocation9 + $0x10] sm:$0xf]
        %v1164 = vld [vmem:[#allocation9 + $0x14] sm:$0xf]
        %v1165 = vld [vmem:[#allocation9 + $0x18] sm:$0xf]
        %v1166 = vld [vmem:[#allocation9 + $0x1c] sm:$0xf]
        %v1167 = vld [vmem:[#allocation9 + $0x20] sm:$0xf]
        %v1168 = vld [vmem:[#allocation9 + $0x24] sm:$0xf]
        %v1169 = vld [vmem:[#allocation9 + $0x28] sm:$0xf]
        %v1170 = vld [vmem:[#allocation9 + $0x2c] sm:$0xf]
        %v1171 = vld [vmem:[#allocation9 + $0x30] sm:$0xf]
        %v1172 = vld [vmem:[#allocation9 + $0x34] sm:$0xf]
        %v1173 = vld [vmem:[#allocation9 + $0x38] sm:$0xf]
        %v1174 = vld [vmem:[#allocation9 + $0x3c] sm:$0xf]
        %v1175 = vld [vmem:[#allocation9 + $0x40] sm:$0xf]
        %v1176 = vld [vmem:[#allocation9 + $0x44] sm:$0xf]
        %v1177 = vld [vmem:[#allocation9 + $0x48] sm:$0xf]
        %v1178 = vld [vmem:[#allocation9 + $0x4c] sm:$0xf]
        %v1179 = vld [vmem:[#allocation9 + $0x50] sm:$0xf]
        %v1180 = vld [vmem:[#allocation9 + $0x54] sm:$0xf]
        %v1181 = vld [vmem:[#allocation9 + $0x58] sm:$0xf]
        %v1182 = vld [vmem:[#allocation9 + $0x5c] sm:$0xf]
        %v1183 = vld [vmem:[#allocation9 + $0x60] sm:$0xf]
        %v1184 = vld [vmem:[#allocation9 + $0x64] sm:$0xf]
        %v1185 = vld [vmem:[#allocation9 + $0x68] sm:$0xf]
        %v1186 = vld [vmem:[#allocation9 + $0x6c] sm:$0xf]
        %v1187 = vld [vmem:[#allocation9 + $0x70] sm:$0xf]
        %v1188 = vld [vmem:[#allocation9 + $0x74] sm:$0xf]
        %v1189 = vld [vmem:[#allocation9 + $0x78] sm:$0xf]
        %v1190 = vld [vmem:[#allocation9 + $0x7c] sm:$0xf]
        %v1191 = vld [vmem:[#allocation9 + $0x80] sm:$0xf]
        %v1192 = vld [vmem:[#allocation9 + $0x84] sm:$0xf]
        %v1193 = vld [vmem:[#allocation9 + $0x88] sm:$0xf]
        %v1194 = vld [vmem:[#allocation9 + $0x8c] sm:$0xf]
        %v1195 = vld [vmem:[#allocation9 + $0x90] sm:$0xf]
        %v1196 = vld [vmem:[#allocation9 + $0x94] sm:$0xf]
        %v1197 = vld [vmem:[#allocation9 + $0x98] sm:$0xf]
        %v1198 = vld [vmem:[#allocation9 + $0x9c] sm:$0xf]
        %v1199 = vld [vmem:[#allocation9 + $0xa0] sm:$0xf]
        %v1200 = vld [vmem:[#allocation9 + $0xa4] sm:$0xf]
        %v1201 = vld [vmem:[#allocation9 + $0xa8] sm:$0xf]
        %v1202 = vld [vmem:[#allocation9 + $0xac] sm:$0xf]
        %v1203 = vld [vmem:[#allocation9 + $0xb0] sm:$0xf]
        %v1204 = vld [vmem:[#allocation9 + $0xb4] sm:$0xf]
        %v1205 = vld [vmem:[#allocation9 + $0xb8] sm:$0xf]
        %v1206 = vld [vmem:[#allocation9 + $0xbc] sm:$0xf]
        %v1207 = vld [vmem:[#allocation9 + $0xc0] sm:$0xf]
        %v1208 = vld [vmem:[#allocation9 + $0xc4] sm:$0xf]
        %v1209 = vld [vmem:[#allocation9 + $0xc8] sm:$0xf]
        %v1210 = vld [vmem:[#allocation9 + $0xcc] sm:$0xf]
        %v1211 = vld [vmem:[#allocation9 + $0xd0] sm:$0xf]
        %v1212 = vld [vmem:[#allocation9 + $0xd4] sm:$0xf]
        %v1213 = vld [vmem:[#allocation9 + $0xd8] sm:$0xf]
        %v1214 = vld [vmem:[#allocation9 + $0xdc] sm:$0xf]
        %v1215 = vld [vmem:[%s4] sm:$0x1]
        %v1217 = vlaneseq
        %v1218 = vshrl.u32 %v1217, 7
        %v1219 = vsub.s32 0, %v1218
        %v1220 = vrot.slane %v1215, %v1219
        %v1224 = vunpack.c.l.b16 %v1157
        %v1225 = vunpack.c.h.b16 %v1157
        %v1226 = vunpack.c.l.b16 %v1158
        %v1227 = vunpack.c.h.b16 %v1158
        %v1228 = vpack.c.b16 %v1224, %v1224
        %v1229 = vpack.c.b16 %v1225, %v1225
        %v1230 = vpack.c.b16 %v1226, %v1226
        %v1231 = vpack.c.b16 %v1227, %v1227
        %v1291 = vunpack.c.l.b16 %v1159
        %v1292 = vunpack.c.l.b16 %v1160
        %v1293 = vunpack.c.l.b16 %v1161
        %v1294 = vunpack.c.l.b16 %v1162
        %v1295 = vunpack.c.l.b16 %v1163
        %v1296 = vunpack.c.l.b16 %v1164
        %v1297 = vunpack.c.l.b16 %v1165
        %v1298 = vunpack.c.l.b16 %v1166
        %v1299 = vunpack.c.l.b16 %v1167
        %v1300 = vunpack.c.l.b16 %v1168
        %v1301 = vunpack.c.l.b16 %v1169
        %v1302 = vunpack.c.l.b16 %v1170
        %v1303 = vunpack.c.l.b16 %v1171
        %v1304 = vunpack.c.l.b16 %v1172
        %v1305 = vunpack.c.l.b16 %v1173
        %v1306 = vunpack.c.l.b16 %v1174
        %v1307 = vunpack.c.l.b16 %v1175
        %v1308 = vunpack.c.l.b16 %v1176
        %v1309 = vunpack.c.l.b16 %v1177
        %v1310 = vunpack.c.l.b16 %v1178
        %v1311 = vunpack.c.l.b16 %v1179
        %v1312 = vunpack.c.l.b16 %v1180
        %v1313 = vunpack.c.l.b16 %v1181
        %v1314 = vunpack.c.l.b16 %v1182
        %v1315 = vunpack.c.l.b16 %v1183
        %v1316 = vunpack.c.l.b16 %v1184
        %v1317 = vunpack.c.l.b16 %v1185
        %v1318 = vunpack.c.l.b16 %v1186
        %v1319 = vunpack.c.l.b16 %v1187
        %v1320 = vunpack.c.l.b16 %v1188
        %v1321 = vunpack.c.l.b16 %v1189
        %v1322 = vunpack.c.l.b16 %v1190
        %v1323 = vunpack.c.l.b16 %v1191
        %v1324 = vunpack.c.l.b16 %v1192
        %v1325 = vunpack.c.l.b16 %v1193
        %v1326 = vunpack.c.l.b16 %v1194
        %v1327 = vunpack.c.l.b16 %v1195
        %v1328 = vunpack.c.l.b16 %v1196
        %v1329 = vunpack.c.l.b16 %v1197
        %v1330 = vunpack.c.l.b16 %v1198
        %v1331 = vunpack.c.l.b16 %v1199
        %v1332 = vunpack.c.l.b16 %v1200
        %v1333 = vunpack.c.l.b16 %v1201
        %v1334 = vunpack.c.l.b16 %v1202
        %v1335 = vunpack.c.l.b16 %v1203
        %v1336 = vunpack.c.l.b16 %v1204
        %v1337 = vunpack.c.l.b16 %v1205
        %v1338 = vunpack.c.l.b16 %v1206
        %v1339 = vunpack.c.l.b16 %v1207
        %v1340 = vunpack.c.l.b16 %v1208
        %v1341 = vunpack.c.l.b16 %v1209
        %v1342 = vunpack.c.l.b16 %v1210
        %v1343 = vunpack.c.l.b16 %v1211
        %v1344 = vunpack.c.l.b16 %v1212
        %v1345 = vunpack.c.l.b16 %v1213
        %v1346 = vunpack.c.l.b16 %v1214
        %v1347 = vpack.c.b16 %v1292, %v1291
        %v1348 = vpack.c.b16 %v1294, %v1293
        %v1349 = vpack.c.b16 %v1296, %v1295
        %v1350 = vpack.c.b16 %v1298, %v1297
        %v1351 = vpack.c.b16 %v1300, %v1299
        %v1352 = vpack.c.b16 %v1302, %v1301
        %v1353 = vpack.c.b16 %v1304, %v1303
        %v1354 = vpack.c.b16 %v1306, %v1305
        %v1355 = vpack.c.b16 %v1308, %v1307
        %v1356 = vpack.c.b16 %v1310, %v1309
        %v1357 = vpack.c.b16 %v1312, %v1311
        %v1358 = vpack.c.b16 %v1314, %v1313
        %v1359 = vpack.c.b16 %v1316, %v1315
        %v1360 = vpack.c.b16 %v1318, %v1317
        %v1361 = vpack.c.b16 %v1320, %v1319
        %v1362 = vpack.c.b16 %v1322, %v1321
        %v1363 = vpack.c.b16 %v1324, %v1323
        %v1364 = vpack.c.b16 %v1326, %v1325
        %v1365 = vpack.c.b16 %v1328, %v1327
        %v1366 = vpack.c.b16 %v1330, %v1329
        %v1367 = vpack.c.b16 %v1332, %v1331
        %v1368 = vpack.c.b16 %v1334, %v1333
        %v1369 = vpack.c.b16 %v1336, %v1335
        %v1370 = vpack.c.b16 %v1338, %v1337
        %v1371 = vpack.c.b16 %v1340, %v1339
        %v1372 = vpack.c.b16 %v1342, %v1341
        %v1373 = vpack.c.b16 %v1344, %v1343
        %v1374 = vpack.c.b16 %v1346, %v1345
        %v1404 = vsel %vm356, %v1231, 0
        %1406 = vmatprep.subr.bf16.mxu0 0
        %1407 = vmatpush1.bf16.msra.mxu0 %v1347
        %1408 = vmatprep.subr.bf16.mxu0 0
        %1409 = vmatpush1.bf16.msra.mxu0 %v1348
        %1410 = vmatprep.subr.bf16.mxu0 0
        %1411 = vmatpush1.bf16.msra.mxu0 %v1349
        %1412 = vmatprep.subr.bf16.mxu0 0
        %1413 = vmatpush1.bf16.msra.mxu0 %v1350
        %1414 = vmatprep.subr.bf16.mxu0 0
        %1415 = vmatpush1.bf16.msra.mxu0 %v1351
        %1416 = vmatprep.subr.bf16.mxu0 0
        %1417 = vmatpush1.bf16.msra.mxu0 %v1352
        %1418 = vmatprep.subr.bf16.mxu0 0
        %1419 = vmatpush1.bf16.msra.mxu0 %v1353
        %1420 = vmatprep.subr.bf16.mxu0 0
        %1421 = vmatpush1.bf16.msra.mxu0 %v1354
        %1422 = vmatprep.subr.bf16.mxu0 0
        %1423 = vmatpush1.bf16.msra.mxu0 %v1355
        %1424 = vmatprep.subr.bf16.mxu0 0
        %1425 = vmatpush1.bf16.msra.mxu0 %v1356
        %1426 = vmatprep.subr.bf16.mxu0 0
        %1427 = vmatpush1.bf16.msra.mxu0 %v1357
        %1428 = vmatprep.subr.bf16.mxu0 0
        %1429 = vmatpush1.bf16.msra.mxu0 %v1358
        %1430 = vmatprep.subr.bf16.mxu0 0
        %1431 = vmatpush1.bf16.msra.mxu0 %v1359
        %1432 = vmatprep.subr.bf16.mxu0 0
        %1433 = vmatpush1.bf16.msra.mxu0 %v1360
        %1434 = vmatprep.subr.bf16.mxu0 0
        %1435 = vmatpush1.bf16.msra.mxu0 %v1361
        %1436 = vmatprep.subr.bf16.mxu0 0
        %1437 = vmatpush1.bf16.msra.mxu0 %v1362
        %1438 = vmatprep.mubr.bf16.mxu0 %v1229
        %1439 = vmatmul.mubr.bf16.gmra.mrb[0].mxu0 %v1228
        %v1440 = vpop.f32.mrb[0].mxu0
        %v1441 = vadd.f32 %v1220, %v1440
        %v1442 = vpop.f32.mrb[0].mxu0
        %v1443 = vpop.f32.mrb[0].mxu0
        %v1444 = vpop.f32.mrb[0].mxu0
        %1445 = vdwg.mxu0
        %1446 = vmatprep.subr.bf16.mxu0 0
        %1447 = vmatpush1.bf16.msra.mxu0 %v1363
        %1448 = vmatprep.subr.bf16.mxu0 0
        %1449 = vmatpush1.bf16.msra.mxu0 %v1364
        %1450 = vmatprep.subr.bf16.mxu0 0
        %1451 = vmatpush1.bf16.msra.mxu0 %v1365
        %1452 = vmatprep.subr.bf16.mxu0 0
        %1453 = vmatpush1.bf16.msra.mxu0 %v1366
        %1454 = vmatprep.subr.bf16.mxu0 0
        %1455 = vmatpush1.bf16.msra.mxu0 %v1367
        %1456 = vmatprep.subr.bf16.mxu0 0
        %1457 = vmatpush1.bf16.msra.mxu0 %v1368
        %1458 = vmatprep.subr.bf16.mxu0 0
        %1459 = vmatpush1.bf16.msra.mxu0 %v1369
        %1460 = vmatprep.subr.bf16.mxu0 0
        %1461 = vmatpush1.bf16.msra.mxu0 %v1370
        %1462 = vmatprep.subr.bf16.mxu0 0
        %1463 = vmatpush1.bf16.msra.mxu0 %v1371
        %1464 = vmatprep.subr.bf16.mxu0 0
        %1465 = vmatpush1.bf16.msra.mxu0 %v1372
        %1466 = vmatprep.subr.bf16.mxu0 0
        %1467 = vmatpush1.bf16.msra.mxu0 %v1373
        %1468 = vmatprep.subr.bf16.mxu0 0
        %1469 = vmatpush1.bf16.msra.mxu0 %v1374
        %1470 = vmatprep.subr.bf16.mxu0 0
        %1471 = vmatpush1.bf16.msra.mxu0 0
        %1472 = vmatprep.subr.bf16.mxu0 0
        %1473 = vmatpush1.bf16.msra.mxu0 0
        %1474 = vmatprep.subr.bf16.mxu0 0
        %1475 = vmatpush1.bf16.msra.mxu0 0
        %1476 = vmatprep.subr.bf16.mxu0 0
        %1477 = vmatpush1.bf16.msra.mxu0 0
        %1478 = vmatprep.mubr.bf16.mxu0 %v1404
        %1479 = vmatmul.mubr.bf16.gmra.mrb[0].mxu0 %v1230
        %v1480 = vpop.f32.mrb[0].mxu0
        %v1481 = vadd.f32 %v1441, %v1480
        %v1482 = vpop.f32.mrb[0].mxu0
        %v1483 = vpop.f32.mrb[0].mxu0
        %v1484 = vpop.f32.mrb[0].mxu0
        %1485 = vdwg.mxu0
        %1486 = vst [vmem:[%s351] sm:$0xff] %v1481
        %s1487 = sand.u32 %s170, 1
        %s1488 = scalar_lea.sflag [#allocation5], %s1487
        %s1489 = sand.u32 %s170, 1
        %s1490 = smul.addr %s1489, 8
        %s1491 = scalar_lea.vmem [#allocation11], %s1490
        // Predicated region
        $region57: #{tpu_custom_call.1} parent=39 // pred_check
          %p1492 = pneg %p180
        $region58: #{tpu_custom_call.1} parent=39 // pred_check_branch
          %1494 = sbr.rel (%p1492) target = $region60
        $region59: #{tpu_custom_call.1} parent=39 // pred_region
          %s1496 = ssub.s32 128, 128
          %1497 = vsyncadd %s1488, %s1496
          %s1498 = sadd.s32 %s31, %s30
          %s1499 = smul.addr %s1498, 128
          %s1500 = scalar_lea.hbm %s5, %s1499
          %s1502 = sshll.u32 %s1491, 4
          %s1503 = int_to_ptr.vmem [resolvable:$true] %s1502
          %1505 = dma.vmem_to_hbm [thread:$0]  %s1503, 128, %s1500, %s1488
        $region60: #{tpu_custom_call.1} parent=39 // pred_fallthru
          _
      $region40: #{tpu_custom_call.1} parent=5 // pred_fallthru
        _
      %p1506 = scmp.le.s32.totalorder 2, %s21
      // Predicated region
      $region61: #{tpu_custom_call.1} parent=5 // pred_check
        %p1507 = pneg %p1506
      $region62: #{tpu_custom_call.1} parent=5 // pred_check_branch
        %1509 = sbr.rel (%p1507) target = $region64
      $region63: #{tpu_custom_call.1} parent=5 // pred_region
        %s1510 = ssub.s32 %s21, 2
        // Predicated region
        $region65: #{tpu_custom_call.1} parent=63 // pred_check
          %p1511 = pneg %p186
        $region66: #{tpu_custom_call.1} parent=63 // pred_check_branch
          %1513 = sbr.rel (%p1511) target = $region68
        $region67: #{tpu_custom_call.1} parent=63 // pred_region
          %s1514 = sand.u32 %s171, 1
          %s1515 = scalar_lea.sflag [#allocation5], %s1514
          %s1516 = sand.u32 %s171, 1
          %s1517 = smul.addr %s1516, 8
          %s1518 = scalar_lea.vmem [#allocation11], %s1517
          %1519 = dma.done %s1515, 128
        $region68: #{tpu_custom_call.1} parent=63 // pred_fallthru
          _
      $region64: #{tpu_custom_call.1} parent=5 // pred_fallthru
        _
    $region6: #{tpu_custom_call.1} parent=1 // loop_footer
      %s25 = sadd.s32 1, %s21
    $region7: #{tpu_custom_call.1} parent=1 // loop_footer_branch
      %20 = sbr.rel target = $region3
    $region8: #{tpu_custom_call.1} parent=1 // loop_exit
      _
    %1520 = vsyncpa [#allocation4], 1
    %s1521 = scalar_lea.sflag [#allocation4], 1
    %1522 = vsyncpa %s1521, 1
    %1523 = vsyncpa [#allocation7], 1
    %s1524 = scalar_lea.sflag [#allocation7], 1
    %1525 = vsyncpa %s1524, 1
    %1526 = vsyncpa [#allocation10], 1
    %1527 = vsyncpa [#allocation5], 1
    %s1528 = scalar_lea.sflag [#allocation5], 1
    %1529 = vsyncpa %s1528, 1

</llo_original>
